<compile_context>
chip_gen: v7x
topology: tpu7x:2x2x1
jax: 0.10.0
libtpu: 0.0.40
codegen_flags: <defaults>
</compile_context>

<pallas_src>
import jax
import jax.numpy as jnp
from jax import lax
from jax.experimental import pallas as pl
from jax.experimental.pallas import tpu as pltpu


def _round_up(x, m):
    return ((x + m - 1) // m) * m


# -----------------------------------------------------------------------------
# Plain-JAX glue: im2col for a 3x3 / stride-2 / valid conv (matches nn.Conv2d(.., (3,3), 2)).
# Emitted in bf16 so the duplicated patches cost half the HBM bytes.
# TODO(synk): in-kernel tap formation (streaming the raw NHWC activation with strided reads)
#             would remove this materialization entirely; kept as glue for now.
# -----------------------------------------------------------------------------
def im2col(x_nhwc, kh=3, kw=3, stride=2):
    x = x_nhwc.astype(jnp.bfloat16)
    B, H, W, C = x.shape
    Ho = (H - kh) // stride + 1
    Wo = (W - kw) // stride + 1
    cols = []
    for di in range(kh):
        for dj in range(kw):
            cols.append(x[:, di:di + stride * (Ho - 1) + 1:stride,
                          dj:dj + stride * (Wo - 1) + 1:stride, :])
    patches = jnp.stack(cols, axis=3)                       # (B, Ho, Wo, kh*kw, C)
    return patches.reshape(B * Ho * Wo, kh * kw * C), (B, Ho, Wo)


# -----------------------------------------------------------------------------
# Fused Conv(as matmul) + train-mode BatchNorm + ReLU — single pallas_call per layer.
# -----------------------------------------------------------------------------
def _make_conv_bn_relu_kernel(tm, n_tiles, inv_m, eps=1e-5):
    def kernel(p_ref, w_ref, g_ref, b_ref, o_ref, y_scr, s1_scr, s2_scr):
        i = pl.program_id(0)

        @pl.when(i == 0)
        def _():
            s1_scr[...] = jnp.zeros_like(s1_scr)
            s2_scr[...] = jnp.zeros_like(s2_scr)

        # bf16 MXU matmul with f32 accumulation; result stays VMEM-resident in y_scr.
        y = jnp.dot(p_ref[...], w_ref[...], preferred_element_type=jnp.float32)
        row0 = pl.multiple_of(i * tm, tm)
        y_scr[pl.ds(row0, tm), :] = y
        # Zero-padded rows contribute exactly 0 to both statistics.
        s1_scr[...] += jnp.sum(y, axis=0, keepdims=True)
        s2_scr[...] += jnp.sum(y * y, axis=0, keepdims=True)

        @pl.when(i == n_tiles - 1)
        def _():
            # Train-mode batch statistics over the true M rows (biased var, eps=1e-5).
            mean = s1_scr[...] * inv_m
            var = jnp.maximum(s2_scr[...] * inv_m - mean * mean, 0.0)   # clamp: avoid NaN from f32 cancellation
            scale = g_ref[...] * lax.rsqrt(var + eps)
            shift = b_ref[...] - mean * scale
            o_ref[...] = jnp.maximum(y_scr[...] * scale + shift, 0.0).astype(o_ref.dtype)

    return kernel


def conv_bn_relu_layer(x_nhwc, w_mm, gamma, beta, *, vmem_budget=20 << 20):
    """One Conv2d(3x3, stride 2) + BatchNorm2d(train mode) + ReLU layer.

    x_nhwc : (B, H, W, Cin_p)    activation (channels already lane-padded; pads are exact 0)
    w_mm   : (9*Cin_p, Cout_p)   matmul-layout conv weight, zero rows/cols in the pads
    gamma, beta : (1, Cout_p)    BN affine params (0 in padded channels)
    Conv2d bias is omitted: a per-channel constant is exactly cancelled by the
    train-mode BN mean subtraction.
    Returns (B, Ho, Wo, Cout_p) bf16 with padded channels exactly 0.
    """
    patches, (B, Ho, Wo) = im2col(x_nhwc)                   # (M, K) bf16 glue
    M, K = patches.shape
    Cout = w_mm.shape[1]                                    # already a multiple of 128

    K_pad = _round_up(K, 128)                               # lane-dense contraction dim

    # Row tiling: 32-aligned (bf16 sublane packing); tm capped from a VMEM byte budget
    # so the kernel fits v7x's smaller scoped VMEM.
    M_pad0 = _round_up(M, 32)
    fixed = (M_pad0 * Cout * 4            # full f32 result scratch
             + 2 * M_pad0 * Cout * 2      # bf16 output block (conservatively x2)
             + 2 * K_pad * Cout * 2       # weight buffers
             + 4 * Cout * 4 + (256 << 10))
    avail = max(vmem_budget - fixed, 2 * 32 * K_pad * 2)
    tm = int(max(32, min((avail // (2 * K_pad * 2)) // 32 * 32, 1024, M_pad0)))
    n_tiles = -(-M_pad0 // tm)
    M_pad = n_tiles * tm

    patches = jnp.pad(patches, ((0, M_pad - M), (0, K_pad - K)))
    w_bf16 = jnp.pad(w_mm, ((0, K_pad - K), (0, 0))).astype(jnp.bfloat16)

    est_vmem = (2 * tm * K_pad * 2 + 2 * K_pad * Cout * 2 + 2 * M_pad * Cout * 2
                + M_pad * Cout * 4 + 4 * Cout * 4 + (256 << 10))
    vmem_limit = int(min(max(2 * est_vmem, 32 << 20), 48 << 20))

    kernel = _make_conv_bn_relu_kernel(tm, n_tiles, 1.0 / M)
    out = pl.pallas_call(
        kernel,
        out_shape=jax.ShapeDtypeStruct((M_pad, Cout), jnp.bfloat16),
        grid=(n_tiles,),
        in_specs=[
            pl.BlockSpec((tm, K_pad), lambda i: (i, 0)),
            pl.BlockSpec((K_pad, Cout), lambda i: (0, 0)),      # constant index -> fetched once
            pl.BlockSpec((1, Cout), lambda i: (0, 0)),
            pl.BlockSpec((1, Cout), lambda i: (0, 0)),
        ],
        out_specs=pl.BlockSpec((M_pad, Cout), lambda i: (0, 0)),  # VMEM-resident, single flush
        scratch_shapes=[pltpu.VMEM((M_pad, Cout), jnp.float32),   # full f32 conv result
                        pltpu.VMEM((1, Cout), jnp.float32),       # per-channel sum
                        pltpu.VMEM((1, Cout), jnp.float32)],      # per-channel sum of squares
        compiler_params=pltpu.CompilerParams(
            dimension_semantics=("arbitrary",),
            vmem_limit_bytes=vmem_limit),
        cost_estimate=pl.CostEstimate(
            flops=2 * M_pad * K_pad * Cout,
            transcendentals=0,
            bytes_accessed=(M_pad * K_pad * 2 + K_pad * Cout * 2
                            + M_pad * Cout * 2 + 4 * Cout * 4)),
    )(patches, w_bf16, gamma, beta)

    return out[:M].reshape(B, Ho, Wo, Cout)


# -----------------------------------------------------------------------------
# Fused GRU (PyTorch gate order [r, z, n]) + Linear(128,128) + tanh in one pallas_call.
# Input projection hoisted out of the time loop as one parallel MXU matmul and kept as an
# SSA value; only the h-dependent matmul stays in the recurrence.  Per-step hidden states
# are kept in registers and fed straight into the final linear.
# -----------------------------------------------------------------------------
def _make_gru_linear_tanh_kernel(T, H):
    def kernel(x_ref, wih_ref, whh_ref, bih_ref, bhh_ref, lw_ref, lb_ref, o_ref):
        gi = jnp.dot(x_ref[...], wih_ref[...],
                     preferred_element_type=jnp.float32) + bih_ref[...]   # (T, 3H) f32, SSA
        whh = whh_ref[...]                                                # (H, 3H) bf16
        bhh = bhh_ref[...]                                                # (1, 3H) f32

        h = jnp.zeros((1, H), jnp.float32)
        hs = []
        # T (== batch B) is small and static here; static slices keep gi in registers.
        # For large T, switch to lax.fori_loop with bounded unroll + a VMEM hs scratch.
        for t in range(T):
            gi_t = gi[t:t + 1, :]
            gh = jnp.dot(h.astype(jnp.bfloat16), whh,
                         preferred_element_type=jnp.float32) + bhh
            r = jax.nn.sigmoid(gi_t[:, :H] + gh[:, :H])
            z = jax.nn.sigmoid(gi_t[:, H:2 * H] + gh[:, H:2 * H])
            n = jnp.tanh(gi_t[:, 2 * H:] + r * gh[:, 2 * H:])
            h = (1.0 - z) * n + z * h
            hs.append(h)

        hs_all = jnp.concatenate(hs, axis=0)                              # (T, H) f32
        y = jnp.dot(hs_all.astype(jnp.bfloat16), lw_ref[...],
                    preferred_element_type=jnp.float32) + lb_ref[...]
        o_ref[...] = jnp.tanh(y)

    return kernel


def gru_linear_tanh(x_last, wih_t, whh_t, bih, bhh, lw, lb):
    T, Hin = x_last.shape
    H = whh_t.shape[0]
    return pl.pallas_call(
        _make_gru_linear_tanh_kernel(T, H),
        out_shape=jax.ShapeDtypeStruct((T, H), jnp.float32),
        grid=(1,),
        in_specs=[
            pl.BlockSpec((T, Hin), lambda i: (0, 0)),
            pl.BlockSpec((Hin, 3 * H), lambda i: (0, 0)),
            pl.BlockSpec((H, 3 * H), lambda i: (0, 0)),
            pl.BlockSpec((1, 3 * H), lambda i: (0, 0)),
            pl.BlockSpec((1, 3 * H), lambda i: (0, 0)),
            pl.BlockSpec((H, H), lambda i: (0, 0)),
            pl.BlockSpec((1, H), lambda i: (0, 0)),
        ],
        out_specs=pl.BlockSpec((T, H), lambda i: (0, 0)),
        compiler_params=pltpu.CompilerParams(dimension_semantics=("arbitrary",)),
    )(x_last, wih_t, whh_t, bih, bhh, lw, lb)


# -----------------------------------------------------------------------------
# Parameter init (deterministic, synthetic) + full forward
# -----------------------------------------------------------------------------
def init_params(key, filters, hidden=128):
    params = {"convs": []}
    last_c = 1
    keys = jax.random.split(key, len(filters) + 6)
    ki = 0
    for c in filters:
        # Natural Conv2d weight layout (kh, kw, Cin, Cout).  Conv2d bias omitted: it is
        # mathematically cancelled by train-mode BatchNorm mean subtraction.
        w = 0.1 * jax.random.normal(keys[ki], (3, 3, last_c, c), jnp.float32); ki += 1
        gamma = jnp.ones((c,), jnp.float32)       # BatchNorm2d default affine init
        beta = jnp.zeros((c,), jnp.float32)
        params["convs"].append((w, gamma, beta))
        last_c = c
    # GRU weights stored transposed: (input, 3*hidden) / (hidden, 3*hidden), gate order [r, z, n]
    params["gru_wih_t"] = 0.05 * jax.random.normal(keys[ki], (128, 3 * hidden), jnp.float32); ki += 1
    params["gru_whh_t"] = 0.05 * jax.random.normal(keys[ki], (hidden, 3 * hidden), jnp.float32); ki += 1
    params["gru_bih"] = 0.05 * jax.random.normal(keys[ki], (1, 3 * hidden), jnp.float32); ki += 1
    params["gru_bhh"] = 0.05 * jax.random.normal(keys[ki], (1, 3 * hidden), jnp.float32); ki += 1
    params["lin_w"] = 0.05 * jax.random.normal(keys[ki], (hidden, hidden), jnp.float32); ki += 1
    params["lin_b"] = 0.05 * jax.random.normal(keys[ki], (1, hidden), jnp.float32); ki += 1
    return params


def reference_encoder_forward(x_nchw, params):
    # x_nchw: (B, 1, H, W) float32, matching the PyTorch NCHW interface.
    x = jnp.transpose(x_nchw, (0, 2, 3, 1))                  # -> NHWC for the conv stack
    cin_p = x.shape[-1]
    for (w, gamma, beta) in params["convs"]:
        kh, kw, cin, cout = w.shape
        cout_p = _round_up(cout, 128)                        # lane-dense channel padding
        # Zero-pad Cin up to the (padded) incoming channel count and Cout to cout_p; the
        # padded activation channels are exactly 0, so numerics are unchanged.
        w_p = jnp.pad(w, ((0, 0), (0, 0), (0, cin_p - cin), (0, cout_p - cout)))
        w_mm = w_p.reshape(kh * kw * cin_p, cout_p)
        g_p = jnp.pad(gamma.reshape(1, -1), ((0, 0), (0, cout_p - cout)))
        b_p = jnp.pad(beta.reshape(1, -1), ((0, 0), (0, cout_p - cout)))
        x = conv_bn_relu_layer(x, w_mm, g_p, b_p)            # one fused Pallas kernel per layer
        cin_p = cout_p

    # PyTorch: x.view(B, C, Ho*Wo).permute(0,2,1) -> (seq=B, batch=Ho*Wo, feat=C) into
    # nn.GRU(batch_first=False).  Only outputs[:, -1, :] (the last *batch* element = last
    # spatial position) is consumed, and GRU batch rows are independent, so the recurrence
    # is restricted to the last spatial position (Ho-1, Wo-1) with identical semantics.
    x_last = x[:, -1, -1, :]                                 # (B, 128) == outputs' batch row -1 input
    return gru_linear_tanh(
        x_last,
        params["gru_wih_t"].astype(jnp.bfloat16),
        params["gru_whh_t"].astype(jnp.bfloat16),
        params["gru_bih"], params["gru_bhh"],
        params["lin_w"].astype(jnp.bfloat16), params["lin_b"])   # (B, 128), tanh applied

# TODO(synk): the module's per-layer `try/except: print(e)` error swallowing and BatchNorm
# running-statistics (running_mean/var momentum) updates have no kernel equivalent; train-mode
# batch statistics are used with no state mutation (so the conv-bias cancellation holds).


if __name__ == "__main__":
    key = jax.random.PRNGKey(0)
    kx, kp = jax.random.split(key)

    B, H, W = 2, 16, 16
    filters = [32, 128]    # last filter must be 128 to feed nn.GRU(input_size=128)

    x = jax.random.normal(kx, (B, 1, H, W), jnp.float32)     # NCHW, 1 input channel
    params = init_params(kp, filters)

    fwd = jax.jit(reference_encoder_forward)
    out = jax.block_until_ready(fwd(x, params))

    assert out.shape == (B, 128) and out.dtype == jnp.float32
    assert bool(jnp.all(jnp.isfinite(out)))
    print("KERNEL_OK")
</pallas_src>

<mosaic_0001>
module attributes {stable_mosaic.version = 11 : i64} {
  func.func @kernel(%arg0: i32, %arg1: memref<128x128xbf16, #tpu.memory_space<vmem>>, %arg2: memref<128x128xbf16, #tpu.memory_space<vmem>>, %arg3: memref<1x128xf32, #tpu.memory_space<vmem>>, %arg4: memref<1x128xf32, #tpu.memory_space<vmem>>, %arg5: memref<128x128xbf16, #tpu.memory_space<vmem>>, %arg6: memref<128x128xf32, #tpu.memory_space<vmem>>, %arg7: memref<1x128xf32, #tpu.memory_space<vmem>>, %arg8: memref<1x128xf32, #tpu.memory_space<vmem>>) attributes {dimension_semantics = [#tpu.dimension_semantics<arbitrary>], iteration_bounds = array<i64: 1>, scalar_prefetch = 0 : i64, scratch_operands = 3 : i64, tpu.core_type = #tpu.core_type<tc>, window_params = [{transform_indices = @transform_0, window_bounds = array<i64: 128, 128>}, {pipeline_mode = #tpu.pipeline_mode<synchronous>, transform_indices = @transform_1, window_bounds = array<i64: 128, 128>}, {pipeline_mode = #tpu.pipeline_mode<synchronous>, transform_indices = @transform_2, window_bounds = array<i64: 1, 128>}, {pipeline_mode = #tpu.pipeline_mode<synchronous>, transform_indices = @transform_3, window_bounds = array<i64: 1, 128>}, {pipeline_mode = #tpu.pipeline_mode<synchronous>, transform_indices = @transform_4, window_bounds = array<i64: 128, 128>}]} {
    %c0_i32 = arith.constant 0 : i32
    %0 = arith.cmpi eq, %arg0, %c0_i32 : i32
    %1 = arith.extui %0 : i1 to i32
    %c0_i32_0 = arith.constant 0 : i32
    %2 = arith.cmpi ne, %1, %c0_i32_0 : i32
    scf.if %2 {
      %cst_17 = arith.constant 0.000000e+00 : f32
      %24 = vector.broadcast %cst_17 : f32 to vector<1x128xf32>
      %c0_18 = arith.constant 0 : index
      %c0_19 = arith.constant 0 : index
      %25 = vector.load %arg7[%c0_18, %c0_19] : memref<1x128xf32, #tpu.memory_space<vmem>>, vector<1x128xf32>
      tpu.vector_store %arg7[%c0_18, %c0_19], %24 {strides = array<i32>} : memref<1x128xf32, #tpu.memory_space<vmem>>, vector<1x128xf32>,
      %cst_20 = arith.constant 0.000000e+00 : f32
      %26 = vector.broadcast %cst_20 : f32 to vector<1x128xf32>
      %c0_21 = arith.constant 0 : index
      %c0_22 = arith.constant 0 : index
      %27 = vector.load %arg8[%c0_21, %c0_22] : memref<1x128xf32, #tpu.memory_space<vmem>>, vector<1x128xf32>
      tpu.vector_store %arg8[%c0_21, %c0_22], %26 {strides = array<i32>} : memref<1x128xf32, #tpu.memory_space<vmem>>, vector<1x128xf32>,
    } else {
    }
    %c0 = arith.constant 0 : index
    %c0_1 = arith.constant 0 : index
    %3 = vector.load %arg1[%c0, %c0_1] : memref<128x128xbf16, #tpu.memory_space<vmem>>, vector<128x128xbf16>
    %c0_2 = arith.constant 0 : index
    %c0_3 = arith.constant 0 : index
    %4 = vector.load %arg2[%c0_2, %c0_3] : memref<128x128xbf16, #tpu.memory_space<vmem>>, vector<128x128xbf16>
    %cst = arith.constant dense<0.000000e+00> : vector<128x128xf32>
    %5 = tpu.matmul %3, %4, %cst {dimension_numbers = #tpu.dot_dimension_numbers<[1], [0], [0], [1], [0, 0, 1, 1], [], []>} : vector<128x128xbf16>, vector<128x128xbf16>, vector<128x128xf32> -> vector<128x128xf32>
    %c128_i32 = arith.constant 128 : i32
    %6 = arith.muli %arg0, %c128_i32 : i32
    %7 = tpu.assume_multiple %6, 128 : i32
    %8 = arith.index_cast %7 : i32 to index
    %c0_4 = arith.constant 0 : index
    %9 = vector.load %arg6[%8, %c0_4] : memref<128x128xf32, #tpu.memory_space<vmem>>, vector<128x128xf32>
    tpu.vector_store %arg6[%8, %c0_4], %5 {strides = array<i32>} : memref<128x128xf32, #tpu.memory_space<vmem>>, vector<128x128xf32>,
    %c0_5 = arith.constant 0 : index
    %c0_6 = arith.constant 0 : index
    %10 = vector.load %arg7[%c0_5, %c0_6] : memref<1x128xf32, #tpu.memory_space<vmem>>, vector<1x128xf32>
    %cst_7 = arith.constant dense<0.000000e+00> : vector<128xf32>
    %11 = vector.multi_reduction <add>, %5, %cst_7 [0] : vector<128x128xf32> to vector<128xf32>
    %12 = vector.shape_cast %11 : vector<128xf32> to vector<1x128xf32>
    %13 = arith.addf %10, %12 : vector<1x128xf32>
    %c0_8 = arith.constant 0 : index
    %c0_9 = arith.constant 0 : index
    %14 = vector.load %arg7[%c0_8, %c0_9] : memref<1x128xf32, #tpu.memory_space<vmem>>, vector<1x128xf32>
    tpu.vector_store %arg7[%c0_8, %c0_9], %13 {strides = array<i32>} : memref<1x128xf32, #tpu.memory_space<vmem>>, vector<1x128xf32>,
    %c0_10 = arith.constant 0 : index
    %c0_11 = arith.constant 0 : index
    %15 = vector.load %arg8[%c0_10, %c0_11] : memref<1x128xf32, #tpu.memory_space<vmem>>, vector<1x128xf32>
    %16 = arith.mulf %5, %5 : vector<128x128xf32>
    %cst_12 = arith.constant dense<0.000000e+00> : vector<128xf32>
    %17 = vector.multi_reduction <add>, %16, %cst_12 [0] : vector<128x128xf32> to vector<128xf32>
    %18 = vector.shape_cast %17 : vector<128xf32> to vector<1x128xf32>
    %19 = arith.addf %15, %18 : vector<1x128xf32>
    %c0_13 = arith.constant 0 : index
    %c0_14 = arith.constant 0 : index
    %20 = vector.load %arg8[%c0_13, %c0_14] : memref<1x128xf32, #tpu.memory_space<vmem>>, vector<1x128xf32>
    tpu.vector_store %arg8[%c0_13, %c0_14], %19 {strides = array<i32>} : memref<1x128xf32, #tpu.memory_space<vmem>>, vector<1x128xf32>,
    %c0_i32_15 = arith.constant 0 : i32
    %21 = arith.cmpi eq, %arg0, %c0_i32_15 : i32
    %22 = arith.extui %21 : i1 to i32
    %c0_i32_16 = arith.constant 0 : i32
    %23 = arith.cmpi ne, %22, %c0_i32_16 : i32
    scf.if %23 {
      %c0_17 = arith.constant 0 : index
      %c0_18 = arith.constant 0 : index
      %24 = vector.load %arg7[%c0_17, %c0_18] : memref<1x128xf32, #tpu.memory_space<vmem>>, vector<1x128xf32>
      %cst_19 = arith.constant 0.0102040814 : f32
      %25 = vector.broadcast %cst_19 : f32 to vector<1x128xf32>
      %26 = arith.mulf %24, %25 : vector<1x128xf32>
      %c0_20 = arith.constant 0 : index
      %c0_21 = arith.constant 0 : index
      %27 = vector.load %arg8[%c0_20, %c0_21] : memref<1x128xf32, #tpu.memory_space<vmem>>, vector<1x128xf32>
      %cst_22 = arith.constant 0.0102040814 : f32
      %28 = vector.broadcast %cst_22 : f32 to vector<1x128xf32>
      %29 = arith.mulf %27, %28 : vector<1x128xf32>
      %30 = arith.mulf %26, %26 : vector<1x128xf32>
      %31 = arith.subf %29, %30 : vector<1x128xf32>
      %cst_23 = arith.constant 0.000000e+00 : f32
      %32 = vector.broadcast %cst_23 : f32 to vector<1x128xf32>
      %33 = arith.maximumf %31, %32 : vector<1x128xf32>
      %c0_24 = arith.constant 0 : index
      %c0_25 = arith.constant 0 : index
      %34 = vector.load %arg3[%c0_24, %c0_25] : memref<1x128xf32, #tpu.memory_space<vmem>>, vector<1x128xf32>
      %cst_26 = arith.constant 9.99999974E-6 : f32
      %35 = vector.broadcast %cst_26 : f32 to vector<1x128xf32>
      %36 = arith.addf %33, %35 : vector<1x128xf32>
      %37 = math.rsqrt %36 : vector<1x128xf32>
      %38 = arith.mulf %34, %37 : vector<1x128xf32>
      %c0_27 = arith.constant 0 : index
      %c0_28 = arith.constant 0 : index
      %39 = vector.load %arg4[%c0_27, %c0_28] : memref<1x128xf32, #tpu.memory_space<vmem>>, vector<1x128xf32>
      %40 = arith.mulf %26, %38 : vector<1x128xf32>
      %41 = arith.subf %39, %40 : vector<1x128xf32>
      %c0_29 = arith.constant 0 : index
      %c0_30 = arith.constant 0 : index
      %42 = vector.load %arg6[%c0_29, %c0_30] : memref<128x128xf32, #tpu.memory_space<vmem>>, vector<128x128xf32>
      %43 = vector.broadcast %38 : vector<1x128xf32> to vector<128x128xf32>
      %44 = arith.mulf %42, %43 : vector<128x128xf32>
      %45 = vector.broadcast %41 : vector<1x128xf32> to vector<128x128xf32>
      %46 = arith.addf %44, %45 : vector<128x128xf32>
      %cst_31 = arith.constant 0.000000e+00 : f32
      %47 = vector.broadcast %cst_31 : f32 to vector<128x128xf32>
      %48 = arith.maximumf %46, %47 : vector<128x128xf32>
      %49 = arith.truncf %48 : vector<128x128xf32> to vector<128x128xbf16>
      %c0_32 = arith.constant 0 : index
      %c0_33 = arith.constant 0 : index
      %50 = vector.load %arg5[%c0_32, %c0_33] : memref<128x128xbf16, #tpu.memory_space<vmem>>, vector<128x128xbf16>
      tpu.vector_store %arg5[%c0_32, %c0_33], %49 {strides = array<i32>} : memref<128x128xbf16, #tpu.memory_space<vmem>>, vector<128x128xbf16>,
    } else {
    }
    return
  }
  func.func @transform_0(%arg0: i32) -> (i32, i32) {
    %c0_i32 = arith.constant 0 : i32
    %c0_i32_0 = arith.constant 0 : i32
    return %arg0, %c0_i32 : i32, i32
  }
  func.func @transform_1(%arg0: i32) -> (i32, i32) {
    %c0_i32 = arith.constant 0 : i32
    %c0_i32_0 = arith.constant 0 : i32
    %c0_i32_1 = arith.constant 0 : i32
    return %c0_i32, %c0_i32_0 : i32, i32
  }
  func.func @transform_2(%arg0: i32) -> (i32, i32) {
    %c0_i32 = arith.constant 0 : i32
    %c0_i32_0 = arith.constant 0 : i32
    %c0_i32_1 = arith.constant 0 : i32
    return %c0_i32, %c0_i32_0 : i32, i32
  }
  func.func @transform_3(%arg0: i32) -> (i32, i32) {
    %c0_i32 = arith.constant 0 : i32
    %c0_i32_0 = arith.constant 0 : i32
    %c0_i32_1 = arith.constant 0 : i32
    return %c0_i32, %c0_i32_0 : i32, i32
  }
  func.func @transform_4(%arg0: i32) -> (i32, i32) {
    %c0_i32 = arith.constant 0 : i32
    %c0_i32_0 = arith.constant 0 : i32
    %c0_i32_1 = arith.constant 0 : i32
    return %c0_i32, %c0_i32_0 : i32, i32
  }
}

module attributes {stable_mosaic.version = 11 : i64} {
  func.func @kernel(%arg0: i32, %arg1: memref<32x1152xbf16, #tpu.memory_space<vmem>>, %arg2: memref<1152x128xbf16, #tpu.memory_space<vmem>>, %arg3: memref<1x128xf32, #tpu.memory_space<vmem>>, %arg4: memref<1x128xf32, #tpu.memory_space<vmem>>, %arg5: memref<32x128xbf16, #tpu.memory_space<vmem>>, %arg6: memref<32x128xf32, #tpu.memory_space<vmem>>, %arg7: memref<1x128xf32, #tpu.memory_space<vmem>>, %arg8: memref<1x128xf32, #tpu.memory_space<vmem>>) attributes {dimension_semantics = [#tpu.dimension_semantics<arbitrary>], iteration_bounds = array<i64: 1>, scalar_prefetch = 0 : i64, scratch_operands = 3 : i64, tpu.core_type = #tpu.core_type<tc>, window_params = [{transform_indices = @transform_0, window_bounds = array<i64: 32, 1152>}, {pipeline_mode = #tpu.pipeline_mode<synchronous>, transform_indices = @transform_1, window_bounds = array<i64: 1152, 128>}, {pipeline_mode = #tpu.pipeline_mode<synchronous>, transform_indices = @transform_2, window_bounds = array<i64: 1, 128>}, {pipeline_mode = #tpu.pipeline_mode<synchronous>, transform_indices = @transform_3, window_bounds = array<i64: 1, 128>}, {pipeline_mode = #tpu.pipeline_mode<synchronous>, transform_indices = @transform_4, window_bounds = array<i64: 32, 128>}]} {
    %c0_i32 = arith.constant 0 : i32
    %0 = arith.cmpi eq, %arg0, %c0_i32 : i32
    %1 = arith.extui %0 : i1 to i32
    %c0_i32_0 = arith.constant 0 : i32
    %2 = arith.cmpi ne, %1, %c0_i32_0 : i32
    scf.if %2 {
      %cst_17 = arith.constant 0.000000e+00 : f32
      %24 = vector.broadcast %cst_17 : f32 to vector<1x128xf32>
      %c0_18 = arith.constant 0 : index
      %c0_19 = arith.constant 0 : index
      %25 = vector.load %arg7[%c0_18, %c0_19] : memref<1x128xf32, #tpu.memory_space<vmem>>, vector<1x128xf32>
      tpu.vector_store %arg7[%c0_18, %c0_19], %24 {strides = array<i32>} : memref<1x128xf32, #tpu.memory_space<vmem>>, vector<1x128xf32>,
      %cst_20 = arith.constant 0.000000e+00 : f32
      %26 = vector.broadcast %cst_20 : f32 to vector<1x128xf32>
      %c0_21 = arith.constant 0 : index
      %c0_22 = arith.constant 0 : index
      %27 = vector.load %arg8[%c0_21, %c0_22] : memref<1x128xf32, #tpu.memory_space<vmem>>, vector<1x128xf32>
      tpu.vector_store %arg8[%c0_21, %c0_22], %26 {strides = array<i32>} : memref<1x128xf32, #tpu.memory_space<vmem>>, vector<1x128xf32>,
    } else {
    }
    %c0 = arith.constant 0 : index
    %c0_1 = arith.constant 0 : index
    %3 = vector.load %arg1[%c0, %c0_1] : memref<32x1152xbf16, #tpu.memory_space<vmem>>, vector<32x1152xbf16>
    %c0_2 = arith.constant 0 : index
    %c0_3 = arith.constant 0 : index
    %4 = vector.load %arg2[%c0_2, %c0_3] : memref<1152x128xbf16, #tpu.memory_space<vmem>>, vector<1152x128xbf16>
    %cst = arith.constant dense<0.000000e+00> : vector<32x128xf32>
    %5 = tpu.matmul %3, %4, %cst {dimension_numbers = #tpu.dot_dimension_numbers<[1], [0], [0], [1], [0, 0, 1, 1], [], []>} : vector<32x1152xbf16>, vector<1152x128xbf16>, vector<32x128xf32> -> vector<32x128xf32>
    %c32_i32 = arith.constant 32 : i32
    %6 = arith.muli %arg0, %c32_i32 : i32
    %7 = tpu.assume_multiple %6, 32 : i32
    %8 = arith.index_cast %7 : i32 to index
    %c0_4 = arith.constant 0 : index
    %9 = vector.load %arg6[%8, %c0_4] : memref<32x128xf32, #tpu.memory_space<vmem>>, vector<32x128xf32>
    tpu.vector_store %arg6[%8, %c0_4], %5 {strides = array<i32>} : memref<32x128xf32, #tpu.memory_space<vmem>>, vector<32x128xf32>,
    %c0_5 = arith.constant 0 : index
    %c0_6 = arith.constant 0 : index
    %10 = vector.load %arg7[%c0_5, %c0_6] : memref<1x128xf32, #tpu.memory_space<vmem>>, vector<1x128xf32>
    %cst_7 = arith.constant dense<0.000000e+00> : vector<128xf32>
    %11 = vector.multi_reduction <add>, %5, %cst_7 [0] : vector<32x128xf32> to vector<128xf32>
    %12 = vector.shape_cast %11 : vector<128xf32> to vector<1x128xf32>
    %13 = arith.addf %10, %12 : vector<1x128xf32>
    %c0_8 = arith.constant 0 : index
    %c0_9 = arith.constant 0 : index
    %14 = vector.load %arg7[%c0_8, %c0_9] : memref<1x128xf32, #tpu.memory_space<vmem>>, vector<1x128xf32>
    tpu.vector_store %arg7[%c0_8, %c0_9], %13 {strides = array<i32>} : memref<1x128xf32, #tpu.memory_space<vmem>>, vector<1x128xf32>,
    %c0_10 = arith.constant 0 : index
    %c0_11 = arith.constant 0 : index
    %15 = vector.load %arg8[%c0_10, %c0_11] : memref<1x128xf32, #tpu.memory_space<vmem>>, vector<1x128xf32>
    %16 = arith.mulf %5, %5 : vector<32x128xf32>
    %cst_12 = arith.constant dense<0.000000e+00> : vector<128xf32>
    %17 = vector.multi_reduction <add>, %16, %cst_12 [0] : vector<32x128xf32> to vector<128xf32>
    %18 = vector.shape_cast %17 : vector<128xf32> to vector<1x128xf32>
    %19 = arith.addf %15, %18 : vector<1x128xf32>
    %c0_13 = arith.constant 0 : index
    %c0_14 = arith.constant 0 : index
    %20 = vector.load %arg8[%c0_13, %c0_14] : memref<1x128xf32, #tpu.memory_space<vmem>>, vector<1x128xf32>
    tpu.vector_store %arg8[%c0_13, %c0_14], %19 {strides = array<i32>} : memref<1x128xf32, #tpu.memory_space<vmem>>, vector<1x128xf32>,
    %c0_i32_15 = arith.constant 0 : i32
    %21 = arith.cmpi eq, %arg0, %c0_i32_15 : i32
    %22 = arith.extui %21 : i1 to i32
    %c0_i32_16 = arith.constant 0 : i32
    %23 = arith.cmpi ne, %22, %c0_i32_16 : i32
    scf.if %23 {
      %c0_17 = arith.constant 0 : index
      %c0_18 = arith.constant 0 : index
      %24 = vector.load %arg7[%c0_17, %c0_18] : memref<1x128xf32, #tpu.memory_space<vmem>>, vector<1x128xf32>
      %cst_19 = arith.constant 0.055555556 : f32
      %25 = vector.broadcast %cst_19 : f32 to vector<1x128xf32>
      %26 = arith.mulf %24, %25 : vector<1x128xf32>
      %c0_20 = arith.constant 0 : index
      %c0_21 = arith.constant 0 : index
      %27 = vector.load %arg8[%c0_20, %c0_21] : memref<1x128xf32, #tpu.memory_space<vmem>>, vector<1x128xf32>
      %cst_22 = arith.constant 0.055555556 : f32
      %28 = vector.broadcast %cst_22 : f32 to vector<1x128xf32>
      %29 = arith.mulf %27, %28 : vector<1x128xf32>
      %30 = arith.mulf %26, %26 : vector<1x128xf32>
      %31 = arith.subf %29, %30 : vector<1x128xf32>
      %cst_23 = arith.constant 0.000000e+00 : f32
      %32 = vector.broadcast %cst_23 : f32 to vector<1x128xf32>
      %33 = arith.maximumf %31, %32 : vector<1x128xf32>
      %c0_24 = arith.constant 0 : index
      %c0_25 = arith.constant 0 : index
      %34 = vector.load %arg3[%c0_24, %c0_25] : memref<1x128xf32, #tpu.memory_space<vmem>>, vector<1x128xf32>
      %cst_26 = arith.constant 9.99999974E-6 : f32
      %35 = vector.broadcast %cst_26 : f32 to vector<1x128xf32>
      %36 = arith.addf %33, %35 : vector<1x128xf32>
      %37 = math.rsqrt %36 : vector<1x128xf32>
      %38 = arith.mulf %34, %37 : vector<1x128xf32>
      %c0_27 = arith.constant 0 : index
      %c0_28 = arith.constant 0 : index
      %39 = vector.load %arg4[%c0_27, %c0_28] : memref<1x128xf32, #tpu.memory_space<vmem>>, vector<1x128xf32>
      %40 = arith.mulf %26, %38 : vector<1x128xf32>
      %41 = arith.subf %39, %40 : vector<1x128xf32>
      %c0_29 = arith.constant 0 : index
      %c0_30 = arith.constant 0 : index
      %42 = vector.load %arg6[%c0_29, %c0_30] : memref<32x128xf32, #tpu.memory_space<vmem>>, vector<32x128xf32>
      %43 = vector.broadcast %38 : vector<1x128xf32> to vector<32x128xf32>
      %44 = arith.mulf %42, %43 : vector<32x128xf32>
      %45 = vector.broadcast %41 : vector<1x128xf32> to vector<32x128xf32>
      %46 = arith.addf %44, %45 : vector<32x128xf32>
      %cst_31 = arith.constant 0.000000e+00 : f32
      %47 = vector.broadcast %cst_31 : f32 to vector<32x128xf32>
      %48 = arith.maximumf %46, %47 : vector<32x128xf32>
      %49 = arith.truncf %48 : vector<32x128xf32> to vector<32x128xbf16>
      %c0_32 = arith.constant 0 : index
      %c0_33 = arith.constant 0 : index
      %50 = vector.load %arg5[%c0_32, %c0_33] : memref<32x128xbf16, #tpu.memory_space<vmem>>, vector<32x128xbf16>
      tpu.vector_store %arg5[%c0_32, %c0_33], %49 {strides = array<i32>} : memref<32x128xbf16, #tpu.memory_space<vmem>>, vector<32x128xbf16>,
    } else {
    }
    return
  }
  func.func @transform_0(%arg0: i32) -> (i32, i32) {
    %c0_i32 = arith.constant 0 : i32
    %c0_i32_0 = arith.constant 0 : i32
    return %arg0, %c0_i32 : i32, i32
  }
  func.func @transform_1(%arg0: i32) -> (i32, i32) {
    %c0_i32 = arith.constant 0 : i32
    %c0_i32_0 = arith.constant 0 : i32
    %c0_i32_1 = arith.constant 0 : i32
    return %c0_i32, %c0_i32_0 : i32, i32
  }
  func.func @transform_2(%arg0: i32) -> (i32, i32) {
    %c0_i32 = arith.constant 0 : i32
    %c0_i32_0 = arith.constant 0 : i32
    %c0_i32_1 = arith.constant 0 : i32
    return %c0_i32, %c0_i32_0 : i32, i32
  }
  func.func @transform_3(%arg0: i32) -> (i32, i32) {
    %c0_i32 = arith.constant 0 : i32
    %c0_i32_0 = arith.constant 0 : i32
    %c0_i32_1 = arith.constant 0 : i32
    return %c0_i32, %c0_i32_0 : i32, i32
  }
  func.func @transform_4(%arg0: i32) -> (i32, i32) {
    %c0_i32 = arith.constant 0 : i32
    %c0_i32_0 = arith.constant 0 : i32
    %c0_i32_1 = arith.constant 0 : i32
    return %c0_i32, %c0_i32_0 : i32, i32
  }
}

module attributes {stable_mosaic.version = 11 : i64} {
  func.func @kernel(%arg0: i32, %arg1: memref<2x128xbf16, #tpu.memory_space<vmem>>, %arg2: memref<128x384xbf16, #tpu.memory_space<vmem>>, %arg3: memref<128x384xbf16, #tpu.memory_space<vmem>>, %arg4: memref<1x384xf32, #tpu.memory_space<vmem>>, %arg5: memref<1x384xf32, #tpu.memory_space<vmem>>, %arg6: memref<128x128xbf16, #tpu.memory_space<vmem>>, %arg7: memref<1x128xf32, #tpu.memory_space<vmem>>, %arg8: memref<2x128xf32, #tpu.memory_space<vmem>>) attributes {dimension_semantics = [#tpu.dimension_semantics<arbitrary>], iteration_bounds = array<i64: 1>, scalar_prefetch = 0 : i64, scratch_operands = 0 : i64, tpu.core_type = #tpu.core_type<tc>, window_params = [{pipeline_mode = #tpu.pipeline_mode<synchronous>, transform_indices = @transform_0, window_bounds = array<i64: 2, 128>}, {pipeline_mode = #tpu.pipeline_mode<synchronous>, transform_indices = @transform_1, window_bounds = array<i64: 128, 384>}, {pipeline_mode = #tpu.pipeline_mode<synchronous>, transform_indices = @transform_2, window_bounds = array<i64: 128, 384>}, {pipeline_mode = #tpu.pipeline_mode<synchronous>, transform_indices = @transform_3, window_bounds = array<i64: 1, 384>}, {pipeline_mode = #tpu.pipeline_mode<synchronous>, transform_indices = @transform_4, window_bounds = array<i64: 1, 384>}, {pipeline_mode = #tpu.pipeline_mode<synchronous>, transform_indices = @transform_5, window_bounds = array<i64: 128, 128>}, {pipeline_mode = #tpu.pipeline_mode<synchronous>, transform_indices = @transform_6, window_bounds = array<i64: 1, 128>}, {pipeline_mode = #tpu.pipeline_mode<synchronous>, transform_indices = @transform_7, window_bounds = array<i64: 2, 128>}]} {
    %c0 = arith.constant 0 : index
    %c0_0 = arith.constant 0 : index
    %0 = vector.load %arg1[%c0, %c0_0] : memref<2x128xbf16, #tpu.memory_space<vmem>>, vector<2x128xbf16>
    %c0_1 = arith.constant 0 : index
    %c0_2 = arith.constant 0 : index
    %1 = vector.load %arg2[%c0_1, %c0_2] : memref<128x384xbf16, #tpu.memory_space<vmem>>, vector<128x384xbf16>
    %cst = arith.constant dense<0.000000e+00> : vector<2x384xf32>
    %2 = tpu.matmul %0, %1, %cst {dimension_numbers = #tpu.dot_dimension_numbers<[1], [0], [0], [1], [0, 0, 1, 1], [], []>} : vector<2x128xbf16>, vector<128x384xbf16>, vector<2x384xf32> -> vector<2x384xf32>
    %c0_3 = arith.constant 0 : index
    %c0_4 = arith.constant 0 : index
    %3 = vector.load %arg4[%c0_3, %c0_4] : memref<1x384xf32, #tpu.memory_space<vmem>>, vector<1x384xf32>
    %4 = vector.broadcast %3 : vector<1x384xf32> to vector<2x384xf32>
    %5 = arith.addf %2, %4 : vector<2x384xf32>
    %c0_5 = arith.constant 0 : index
    %c0_6 = arith.constant 0 : index
    %6 = vector.load %arg3[%c0_5, %c0_6] : memref<128x384xbf16, #tpu.memory_space<vmem>>, vector<128x384xbf16>
    %c0_7 = arith.constant 0 : index
    %c0_8 = arith.constant 0 : index
    %7 = vector.load %arg5[%c0_7, %c0_8] : memref<1x384xf32, #tpu.memory_space<vmem>>, vector<1x384xf32>
    %cst_9 = arith.constant 0.000000e+00 : f32
    %8 = vector.broadcast %cst_9 : f32 to vector<1x128xf32>
    %9 = vector.extract_strided_slice %5 {offsets = [0, 0], sizes = [1, 384], strides = [1, 1]} : vector<2x384xf32> to vector<1x384xf32>
    %10 = arith.truncf %8 : vector<1x128xf32> to vector<1x128xbf16>
    %cst_10 = arith.constant dense<0.000000e+00> : vector<1x384xf32>
    %11 = tpu.matmul %10, %6, %cst_10 {dimension_numbers = #tpu.dot_dimension_numbers<[1], [0], [0], [1], [0, 0, 1, 1], [], []>} : vector<1x128xbf16>, vector<128x384xbf16>, vector<1x384xf32> -> vector<1x384xf32>
    %12 = arith.addf %11, %7 : vector<1x384xf32>
    %13 = vector.extract_strided_slice %9 {offsets = [0, 0], sizes = [1, 128], strides = [1, 1]} : vector<1x384xf32> to vector<1x128xf32>
    %14 = vector.extract_strided_slice %12 {offsets = [0, 0], sizes = [1, 128], strides = [1, 1]} : vector<1x384xf32> to vector<1x128xf32>
    %15 = arith.addf %13, %14 : vector<1x128xf32>
    %16 = arith.negf %15 : vector<1x128xf32>
    %17 = math.exp %16 : vector<1x128xf32>
    %cst_11 = arith.constant 1.000000e+00 : f32
    %18 = vector.broadcast %cst_11 : f32 to vector<1x128xf32>
    %19 = arith.addf %18, %17 : vector<1x128xf32>
    %20 = arith.divf %18, %19 : vector<1x128xf32>
    %21 = vector.extract_strided_slice %9 {offsets = [0, 128], sizes = [1, 128], strides = [1, 1]} : vector<1x384xf32> to vector<1x128xf32>
    %22 = vector.extract_strided_slice %12 {offsets = [0, 128], sizes = [1, 128], strides = [1, 1]} : vector<1x384xf32> to vector<1x128xf32>
    %23 = arith.addf %21, %22 : vector<1x128xf32>
    %24 = arith.negf %23 : vector<1x128xf32>
    %25 = math.exp %24 : vector<1x128xf32>
    %cst_12 = arith.constant 1.000000e+00 : f32
    %26 = vector.broadcast %cst_12 : f32 to vector<1x128xf32>
    %27 = arith.addf %26, %25 : vector<1x128xf32>
    %28 = arith.divf %26, %27 : vector<1x128xf32>
    %29 = vector.extract_strided_slice %9 {offsets = [0, 256], sizes = [1, 128], strides = [1, 1]} : vector<1x384xf32> to vector<1x128xf32>
    %30 = vector.extract_strided_slice %12 {offsets = [0, 256], sizes = [1, 128], strides = [1, 1]} : vector<1x384xf32> to vector<1x128xf32>
    %31 = arith.mulf %20, %30 : vector<1x128xf32>
    %32 = arith.addf %29, %31 : vector<1x128xf32>
    %33 = math.tanh %32 : vector<1x128xf32>
    %cst_13 = arith.constant 1.000000e+00 : f32
    %34 = vector.broadcast %cst_13 : f32 to vector<1x128xf32>
    %35 = arith.subf %34, %28 : vector<1x128xf32>
    %36 = arith.mulf %35, %33 : vector<1x128xf32>
    %37 = arith.mulf %28, %8 : vector<1x128xf32>
    %38 = arith.addf %36, %37 : vector<1x128xf32>
    %39 = vector.extract_strided_slice %5 {offsets = [1, 0], sizes = [1, 384], strides = [1, 1]} : vector<2x384xf32> to vector<1x384xf32>
    %40 = arith.truncf %38 : vector<1x128xf32> to vector<1x128xbf16>
    %cst_14 = arith.constant dense<0.000000e+00> : vector<1x384xf32>
    %41 = tpu.matmul %40, %6, %cst_14 {dimension_numbers = #tpu.dot_dimension_numbers<[1], [0], [0], [1], [0, 0, 1, 1], [], []>} : vector<1x128xbf16>, vector<128x384xbf16>, vector<1x384xf32> -> vector<1x384xf32>
    %42 = arith.addf %41, %7 : vector<1x384xf32>
    %43 = vector.extract_strided_slice %39 {offsets = [0, 0], sizes = [1, 128], strides = [1, 1]} : vector<1x384xf32> to vector<1x128xf32>
    %44 = vector.extract_strided_slice %42 {offsets = [0, 0], sizes = [1, 128], strides = [1, 1]} : vector<1x384xf32> to vector<1x128xf32>
    %45 = arith.addf %43, %44 : vector<1x128xf32>
    %46 = arith.negf %45 : vector<1x128xf32>
    %47 = math.exp %46 : vector<1x128xf32>
    %cst_15 = arith.constant 1.000000e+00 : f32
    %48 = vector.broadcast %cst_15 : f32 to vector<1x128xf32>
    %49 = arith.addf %48, %47 : vector<1x128xf32>
    %50 = arith.divf %48, %49 : vector<1x128xf32>
    %51 = vector.extract_strided_slice %39 {offsets = [0, 128], sizes = [1, 128], strides = [1, 1]} : vector<1x384xf32> to vector<1x128xf32>
    %52 = vector.extract_strided_slice %42 {offsets = [0, 128], sizes = [1, 128], strides = [1, 1]} : vector<1x384xf32> to vector<1x128xf32>
    %53 = arith.addf %51, %52 : vector<1x128xf32>
    %54 = arith.negf %53 : vector<1x128xf32>
    %55 = math.exp %54 : vector<1x128xf32>
    %cst_16 = arith.constant 1.000000e+00 : f32
    %56 = vector.broadcast %cst_16 : f32 to vector<1x128xf32>
    %57 = arith.addf %56, %55 : vector<1x128xf32>
    %58 = arith.divf %56, %57 : vector<1x128xf32>
    %59 = vector.extract_strided_slice %39 {offsets = [0, 256], sizes = [1, 128], strides = [1, 1]} : vector<1x384xf32> to vector<1x128xf32>
    %60 = vector.extract_strided_slice %42 {offsets = [0, 256], sizes = [1, 128], strides = [1, 1]} : vector<1x384xf32> to vector<1x128xf32>
    %61 = arith.mulf %50, %60 : vector<1x128xf32>
    %62 = arith.addf %59, %61 : vector<1x128xf32>
    %63 = math.tanh %62 : vector<1x128xf32>
    %cst_17 = arith.constant 1.000000e+00 : f32
    %64 = vector.broadcast %cst_17 : f32 to vector<1x128xf32>
    %65 = arith.subf %64, %58 : vector<1x128xf32>
    %66 = arith.mulf %65, %63 : vector<1x128xf32>
    %67 = arith.mulf %58, %38 : vector<1x128xf32>
    %68 = arith.addf %66, %67 : vector<1x128xf32>
    %69 = tpu.concatenate %38, %68 in 0 : vector<1x128xf32>, vector<1x128xf32> -> vector<2x128xf32>
    %70 = arith.truncf %69 : vector<2x128xf32> to vector<2x128xbf16>
    %c0_18 = arith.constant 0 : index
    %c0_19 = arith.constant 0 : index
    %71 = vector.load %arg6[%c0_18, %c0_19] : memref<128x128xbf16, #tpu.memory_space<vmem>>, vector<128x128xbf16>
    %cst_20 = arith.constant dense<0.000000e+00> : vector<2x128xf32>
    %72 = tpu.matmul %70, %71, %cst_20 {dimension_numbers = #tpu.dot_dimension_numbers<[1], [0], [0], [1], [0, 0, 1, 1], [], []>} : vector<2x128xbf16>, vector<128x128xbf16>, vector<2x128xf32> -> vector<2x128xf32>
    %c0_21 = arith.constant 0 : index
    %c0_22 = arith.constant 0 : index
    %73 = vector.load %arg7[%c0_21, %c0_22] : memref<1x128xf32, #tpu.memory_space<vmem>>, vector<1x128xf32>
    %74 = vector.broadcast %73 : vector<1x128xf32> to vector<2x128xf32>
    %75 = arith.addf %72, %74 : vector<2x128xf32>
    %76 = math.tanh %75 : vector<2x128xf32>
    %c0_23 = arith.constant 0 : index
    %c0_24 = arith.constant 0 : index
    %77 = vector.load %arg8[%c0_23, %c0_24] : memref<2x128xf32, #tpu.memory_space<vmem>>, vector<2x128xf32>
    tpu.vector_store %arg8[%c0_23, %c0_24], %76 {strides = array<i32>} : memref<2x128xf32, #tpu.memory_space<vmem>>, vector<2x128xf32>,
    return
  }
  func.func @transform_0(%arg0: i32) -> (i32, i32) {
    %c0_i32 = arith.constant 0 : i32
    %c0_i32_0 = arith.constant 0 : i32
    %c0_i32_1 = arith.constant 0 : i32
    return %c0_i32, %c0_i32_0 : i32, i32
  }
  func.func @transform_1(%arg0: i32) -> (i32, i32) {
    %c0_i32 = arith.constant 0 : i32
    %c0_i32_0 = arith.constant 0 : i32
    %c0_i32_1 = arith.constant 0 : i32
    return %c0_i32, %c0_i32_0 : i32, i32
  }
  func.func @transform_2(%arg0: i32) -> (i32, i32) {
    %c0_i32 = arith.constant 0 : i32
    %c0_i32_0 = arith.constant 0 : i32
    %c0_i32_1 = arith.constant 0 : i32
    return %c0_i32, %c0_i32_0 : i32, i32
  }
  func.func @transform_3(%arg0: i32) -> (i32, i32) {
    %c0_i32 = arith.constant 0 : i32
    %c0_i32_0 = arith.constant 0 : i32
    %c0_i32_1 = arith.constant 0 : i32
    return %c0_i32, %c0_i32_0 : i32, i32
  }
  func.func @transform_4(%arg0: i32) -> (i32, i32) {
    %c0_i32 = arith.constant 0 : i32
    %c0_i32_0 = arith.constant 0 : i32
    %c0_i32_1 = arith.constant 0 : i32
    return %c0_i32, %c0_i32_0 : i32, i32
  }
  func.func @transform_5(%arg0: i32) -> (i32, i32) {
    %c0_i32 = arith.constant 0 : i32
    %c0_i32_0 = arith.constant 0 : i32
    %c0_i32_1 = arith.constant 0 : i32
    return %c0_i32, %c0_i32_0 : i32, i32
  }
  func.func @transform_6(%arg0: i32) -> (i32, i32) {
    %c0_i32 = arith.constant 0 : i32
    %c0_i32_0 = arith.constant 0 : i32
    %c0_i32_1 = arith.constant 0 : i32
    return %c0_i32, %c0_i32_0 : i32, i32
  }
  func.func @transform_7(%arg0: i32) -> (i32, i32) {
    %c0_i32 = arith.constant 0 : i32
    %c0_i32_0 = arith.constant 0 : i32
    %c0_i32_1 = arith.constant 0 : i32
    return %c0_i32, %c0_i32_0 : i32, i32
  }
}

</mosaic_0001>

<llo_original>
// kernel: reference_encoder_forward.3
$region0: #{reference_encoder_forward.3}
  #allocation0 [shape = 'u32[]', space=smem, size = 0x4, offset = 0x4, fixed_abs, tag = 'smem constant byte address 0x4 - core index']
  #allocation1 [shape = 'u32[144,128]{1,0:T(1,128)}', space=vmem, size = 0x12000, scoped, tag = 'internal scratch']
  #allocation2 [shape = 'f32[128,128]{1,0:T(8,128)}', space=vmem, size = 0x10000, scoped, tag = 'scratch operand']
  #allocation3 [shape = 'f32[1,128]{1,0:T(1,128)}', space=vmem, size = 0x200, scoped, tag = 'scratch operand']
  #allocation4 [shape = 'f32[1,128]{1,0:T(1,128)}', space=vmem, size = 0x200, scoped, tag = 'scratch operand']
  %s0 = inlined_call_operand.vmem [shape: bf16[128,128], index: 0, kind: input, shape index: {}]
  %s1 = inlined_call_operand.vmem [shape: bf16[128,128], index: 1, kind: input, shape index: {}]
  %s2 = inlined_call_operand.vmem [shape: f32[1,128], index: 2, kind: input, shape index: {}]
  %s3 = inlined_call_operand.vmem [shape: f32[1,128], index: 3, kind: input, shape index: {}]
  %s4 = inlined_call_operand.vmem [shape: bf16[128,128], index: 4, kind: output, shape index: {}]
  %s5 = sld [smem:[#allocation0]]
  $region34: #{reference_encoder_forward.3} parent=0
    _
  %s7 = ssub.s32 1, %s5
  %s8 = scalar_select 0, %s7, %s5
  // Predicated region
  $region2: #{reference_encoder_forward.3} parent=0 // pred_check
    _
  $region3: #{reference_encoder_forward.3} parent=0 // pred_check_branch
    %10 = sbr.rel (0) target = $region5
  $region4: #{reference_encoder_forward.3} parent=0 // pred_region
    _
  $region5: #{reference_encoder_forward.3} parent=0 // pred_fallthru
    _
  // Predicated region
  $region6: #{reference_encoder_forward.3} parent=0 // pred_check
    _
  $region7: #{reference_encoder_forward.3} parent=0 // pred_check_branch
    %12 = sbr.rel (0) target = $region9
  $region8: #{reference_encoder_forward.3} parent=0 // pred_region
    _
  $region9: #{reference_encoder_forward.3} parent=0 // pred_fallthru
    _
  // Predicated region
  $region10: #{reference_encoder_forward.3} parent=0 // pred_check
    _
  $region11: #{reference_encoder_forward.3} parent=0 // pred_check_branch
    %14 = sbr.rel (0) target = $region13
  $region12: #{reference_encoder_forward.3} parent=0 // pred_region
    _
  $region13: #{reference_encoder_forward.3} parent=0 // pred_fallthru
    _
  // Predicated region
  $region14: #{reference_encoder_forward.3} parent=0 // pred_check
    _
  $region15: #{reference_encoder_forward.3} parent=0 // pred_check_branch
    %16 = sbr.rel (0) target = $region17
  $region16: #{reference_encoder_forward.3} parent=0 // pred_region
    _
  $region17: #{reference_encoder_forward.3} parent=0 // pred_fallthru
    _
  %p18 = scmp.eq.s32.totalorder 0, 0
  // Predicated region
  $region18: #{reference_encoder_forward.3} parent=0 // pred_check
    %p19 = pneg %p18
  $region19: #{reference_encoder_forward.3} parent=0 // pred_check_branch
    %21 = sbr.rel (%p19) target = $region21
  $region20: #{reference_encoder_forward.3} parent=0 // pred_region
    %22 = vst [vmem:[#allocation3] sm:$0x1] 0.0
    %23 = vst [vmem:[#allocation4] sm:$0x1] 0.0
  $region21: #{reference_encoder_forward.3} parent=0 // pred_fallthru
    _
  %v24 = vld [vmem:[%s0] sm:$0xf]
  %v25 = vld [vmem:[%s0 + $0x4] sm:$0xf]
  %v26 = vld [vmem:[%s0 + $0x8] sm:$0xf]
  %v27 = vld [vmem:[%s0 + $0xc] sm:$0xf]
  %v28 = vld [vmem:[%s0 + $0x10] sm:$0xf]
  %v29 = vld [vmem:[%s0 + $0x14] sm:$0xf]
  %v30 = vld [vmem:[%s0 + $0x18] sm:$0xf]
  %v31 = vld [vmem:[%s0 + $0x1c] sm:$0xf]
  %v32 = vld [vmem:[%s0 + $0x20] sm:$0xf]
  %v33 = vld [vmem:[%s0 + $0x24] sm:$0xf]
  %v34 = vld [vmem:[%s0 + $0x28] sm:$0xf]
  %v35 = vld [vmem:[%s0 + $0x2c] sm:$0xf]
  %v36 = vld [vmem:[%s0 + $0x30] sm:$0xf]
  %v37 = vld [vmem:[%s0 + $0x34] sm:$0xf]
  %v38 = vld [vmem:[%s0 + $0x38] sm:$0xf]
  %v39 = vld [vmem:[%s0 + $0x3c] sm:$0xf]
  %v40 = vld [vmem:[%s1] sm:$0xf]
  %v41 = vld [vmem:[%s1 + $0x4] sm:$0xf]
  %v42 = vld [vmem:[%s1 + $0x8] sm:$0xf]
  %v43 = vld [vmem:[%s1 + $0xc] sm:$0xf]
  %v44 = vld [vmem:[%s1 + $0x10] sm:$0xf]
  %v45 = vld [vmem:[%s1 + $0x14] sm:$0xf]
  %v46 = vld [vmem:[%s1 + $0x18] sm:$0xf]
  %v47 = vld [vmem:[%s1 + $0x1c] sm:$0xf]
  %v48 = vld [vmem:[%s1 + $0x20] sm:$0xf]
  %v49 = vld [vmem:[%s1 + $0x24] sm:$0xf]
  %v50 = vld [vmem:[%s1 + $0x28] sm:$0xf]
  %v51 = vld [vmem:[%s1 + $0x2c] sm:$0xf]
  %v52 = vld [vmem:[%s1 + $0x30] sm:$0xf]
  %v53 = vld [vmem:[%s1 + $0x34] sm:$0xf]
  %v54 = vld [vmem:[%s1 + $0x38] sm:$0xf]
  %v55 = vld [vmem:[%s1 + $0x3c] sm:$0xf]
  %v72 = vunpack.c.l.b16 %v24
  %v73 = vunpack.c.l.b16 %v25
  %v74 = vunpack.c.l.b16 %v26
  %v75 = vunpack.c.l.b16 %v27
  %v76 = vunpack.c.l.b16 %v28
  %v77 = vunpack.c.l.b16 %v29
  %v78 = vunpack.c.l.b16 %v30
  %v79 = vunpack.c.l.b16 %v31
  %v80 = vunpack.c.l.b16 %v32
  %v81 = vunpack.c.l.b16 %v33
  %v82 = vunpack.c.l.b16 %v34
  %v83 = vunpack.c.l.b16 %v35
  %v84 = vunpack.c.l.b16 %v36
  %v85 = vunpack.c.l.b16 %v37
  %v86 = vunpack.c.l.b16 %v38
  %v87 = vunpack.c.l.b16 %v39
  %v88 = vpack.c.b16 %v73, %v72
  %v89 = vpack.c.b16 %v75, %v74
  %v90 = vpack.c.b16 %v77, %v76
  %v91 = vpack.c.b16 %v79, %v78
  %v92 = vpack.c.b16 %v81, %v80
  %v93 = vpack.c.b16 %v83, %v82
  %v94 = vpack.c.b16 %v85, %v84
  %v95 = vpack.c.b16 %v87, %v86
  %v120 = vunpack.c.l.b16 %v40
  %v121 = vunpack.c.l.b16 %v41
  %v122 = vunpack.c.l.b16 %v42
  %v123 = vunpack.c.l.b16 %v43
  %v124 = vunpack.c.l.b16 %v44
  %v125 = vunpack.c.l.b16 %v45
  %v126 = vunpack.c.l.b16 %v46
  %v127 = vunpack.c.l.b16 %v47
  %v128 = vunpack.c.l.b16 %v48
  %v129 = vunpack.c.l.b16 %v49
  %v130 = vunpack.c.l.b16 %v50
  %v131 = vunpack.c.l.b16 %v51
  %v132 = vunpack.c.l.b16 %v52
  %v133 = vunpack.c.l.b16 %v53
  %v134 = vunpack.c.l.b16 %v54
  %v135 = vunpack.c.l.b16 %v55
  %v136 = vpack.c.b16 %v121, %v120
  %v137 = vpack.c.b16 %v123, %v122
  %v138 = vpack.c.b16 %v125, %v124
  %v139 = vpack.c.b16 %v127, %v126
  %v140 = vpack.c.b16 %v129, %v128
  %v141 = vpack.c.b16 %v131, %v130
  %v142 = vpack.c.b16 %v133, %v132
  %v143 = vpack.c.b16 %v135, %v134
  %152 = vmatprep.subr.bf16.mxu0 0
  %153 = vmatpush1.bf16.msra.mxu0 %v136
  %154 = vmatprep.subr.bf16.mxu0 0
  %155 = vmatpush1.bf16.msra.mxu0 %v137
  %156 = vmatprep.subr.bf16.mxu0 0
  %157 = vmatpush1.bf16.msra.mxu0 %v138
  %158 = vmatprep.subr.bf16.mxu0 0
  %159 = vmatpush1.bf16.msra.mxu0 %v139
  %160 = vmatprep.subr.bf16.mxu0 0
  %161 = vmatpush1.bf16.msra.mxu0 %v140
  %162 = vmatprep.subr.bf16.mxu0 0
  %163 = vmatpush1.bf16.msra.mxu0 %v141
  %164 = vmatprep.subr.bf16.mxu0 0
  %165 = vmatpush1.bf16.msra.mxu0 %v142
  %166 = vmatprep.subr.bf16.mxu0 0
  %167 = vmatpush1.bf16.msra.mxu0 %v143
  %168 = vmatprep.subr.bf16.mxu0 0
  %169 = vmatpush1.bf16.msra.mxu0 0
  %170 = vmatprep.subr.bf16.mxu0 0
  %171 = vmatpush1.bf16.msra.mxu0 0
  %172 = vmatprep.subr.bf16.mxu0 0
  %173 = vmatpush1.bf16.msra.mxu0 0
  %174 = vmatprep.subr.bf16.mxu0 0
  %175 = vmatpush1.bf16.msra.mxu0 0
  %176 = vmatprep.subr.bf16.mxu0 0
  %177 = vmatpush1.bf16.msra.mxu0 0
  %178 = vmatprep.subr.bf16.mxu0 0
  %179 = vmatpush1.bf16.msra.mxu0 0
  %180 = vmatprep.subr.bf16.mxu0 0
  %181 = vmatpush1.bf16.msra.mxu0 0
  %182 = vmatprep.subr.bf16.mxu0 0
  %183 = vmatpush1.bf16.msra.mxu0 0
  %184 = vmatprep.mubr.bf16.mxu0 0
  %185 = vmatmul.mubr.bf16.gmra.mrb[0].mxu0 %v88
  %v186 = vpop.f32.mrb[0].mxu0
  %v187 = vadd.f32 0.0, %v186
  %v188 = vpop.f32.mrb[0].mxu0
  %v189 = vpop.f32.mrb[0].mxu0
  %v190 = vadd.f32 0.0, %v189
  %v191 = vpop.f32.mrb[0].mxu0
  %192 = vmatprep.mubr.bf16.mxu0 0
  %193 = vmatmul.mubr.bf16.gmra.mrb[0].mxu0 %v89
  %v194 = vpop.f32.mrb[0].mxu0
  %v195 = vadd.f32 0.0, %v194
  %v196 = vpop.f32.mrb[0].mxu0
  %v197 = vpop.f32.mrb[0].mxu0
  %v198 = vadd.f32 0.0, %v197
  %v199 = vpop.f32.mrb[0].mxu0
  %200 = vmatprep.mubr.bf16.mxu0 0
  %201 = vmatmul.mubr.bf16.gmra.mrb[0].mxu0 %v90
  %v202 = vpop.f32.mrb[0].mxu0
  %v203 = vadd.f32 0.0, %v202
  %v204 = vpop.f32.mrb[0].mxu0
  %v205 = vpop.f32.mrb[0].mxu0
  %v206 = vadd.f32 0.0, %v205
  %v207 = vpop.f32.mrb[0].mxu0
  %208 = vmatprep.mubr.bf16.mxu0 0
  %209 = vmatmul.mubr.bf16.gmra.mrb[0].mxu0 %v91
  %v210 = vpop.f32.mrb[0].mxu0
  %v211 = vadd.f32 0.0, %v210
  %v212 = vpop.f32.mrb[0].mxu0
  %v213 = vpop.f32.mrb[0].mxu0
  %v214 = vadd.f32 0.0, %v213
  %v215 = vpop.f32.mrb[0].mxu0
  %216 = vmatprep.mubr.bf16.mxu0 0
  %217 = vmatmul.mubr.bf16.gmra.mrb[0].mxu0 %v92
  %v218 = vpop.f32.mrb[0].mxu0
  %v219 = vadd.f32 0.0, %v218
  %v220 = vpop.f32.mrb[0].mxu0
  %v221 = vpop.f32.mrb[0].mxu0
  %v222 = vadd.f32 0.0, %v221
  %v223 = vpop.f32.mrb[0].mxu0
  %224 = vmatprep.mubr.bf16.mxu0 0
  %225 = vmatmul.mubr.bf16.gmra.mrb[0].mxu0 %v93
  %v226 = vpop.f32.mrb[0].mxu0
  %v227 = vadd.f32 0.0, %v226
  %v228 = vpop.f32.mrb[0].mxu0
  %v229 = vpop.f32.mrb[0].mxu0
  %v230 = vadd.f32 0.0, %v229
  %v231 = vpop.f32.mrb[0].mxu0
  %232 = vmatprep.mubr.bf16.mxu0 0
  %233 = vmatmul.mubr.bf16.gmra.mrb[0].mxu0 %v94
  %v234 = vpop.f32.mrb[0].mxu0
  %v235 = vadd.f32 0.0, %v234
  %v236 = vpop.f32.mrb[0].mxu0
  %v237 = vpop.f32.mrb[0].mxu0
  %v238 = vadd.f32 0.0, %v237
  %v239 = vpop.f32.mrb[0].mxu0
  %240 = vmatprep.mubr.bf16.mxu0 0
  %241 = vmatmul.mubr.bf16.gmra.mrb[0].mxu0 %v95
  %v242 = vpop.f32.mrb[0].mxu0
  %v243 = vadd.f32 0.0, %v242
  %v244 = vpop.f32.mrb[0].mxu0
  %v245 = vpop.f32.mrb[0].mxu0
  %v246 = vadd.f32 0.0, %v245
  %v247 = vpop.f32.mrb[0].mxu0
  %248 = vdwg.mxu0
  %s249 = smul.u32 0, 128
  %s250 = scalar_lea.vmem [#allocation2], %s249
  %251 = vst [vmem:[%s250] sm:$0xff] %v187
  %252 = vst [vmem:[%s250 + $0x8] sm:$0xff] %v190
  %253 = vst [vmem:[%s250 + $0x10] sm:$0xff] %v195
  %254 = vst [vmem:[%s250 + $0x18] sm:$0xff] %v198
  %255 = vst [vmem:[%s250 + $0x20] sm:$0xff] %v203
  %256 = vst [vmem:[%s250 + $0x28] sm:$0xff] %v206
  %257 = vst [vmem:[%s250 + $0x30] sm:$0xff] %v211
  %258 = vst [vmem:[%s250 + $0x38] sm:$0xff] %v214
  %259 = vst [vmem:[%s250 + $0x40] sm:$0xff] %v219
  %260 = vst [vmem:[%s250 + $0x48] sm:$0xff] %v222
  %261 = vst [vmem:[%s250 + $0x50] sm:$0xff] %v227
  %262 = vst [vmem:[%s250 + $0x58] sm:$0xff] %v230
  %263 = vst [vmem:[%s250 + $0x60] sm:$0xff] %v235
  %264 = vst [vmem:[%s250 + $0x68] sm:$0xff] %v238
  %265 = vst [vmem:[%s250 + $0x70] sm:$0xff] %v243
  %266 = vst [vmem:[%s250 + $0x78] sm:$0xff] %v246
  %v267 = vld [vmem:[#allocation3] sm:$0x1]
  %v268 = vadd.f32 %v187, %v190
  %v269 = vadd.f32 %v268, %v195
  %v270 = vadd.f32 %v269, %v198
  %v271 = vadd.f32 %v270, %v203
  %v272 = vadd.f32 %v271, %v206
  %v273 = vadd.f32 %v272, %v211
  %v274 = vadd.f32 %v273, %v214
  %v275 = vadd.f32 %v274, %v219
  %v276 = vadd.f32 %v275, %v222
  %v277 = vadd.f32 %v276, %v227
  %v278 = vadd.f32 %v277, %v230
  %v279 = vadd.f32 %v278, %v235
  %v280 = vadd.f32 %v279, %v238
  %v281 = vadd.f32 %v280, %v243
  %v282 = vadd.f32 %v281, %v246
  %v283 = vrot.slane %v282, 4
  %v284 = vadd.f32 %v282, %v283
  %v285 = vrot.slane %v284, 2
  %v286 = vadd.f32 %v284, %v285
  %v287 = vrot.slane %v286, 1
  %v288 = vadd.f32 %v286, %v287
  %v289 = vadd.f32 %v267, %v288
  %290 = vst [vmem:[#allocation3] sm:$0x1] %v289
  %v291 = vld [vmem:[#allocation4] sm:$0x1]
  %v292 = vmul.f32 %v187, %v187
  %v293 = vmul.f32 %v190, %v190
  %v294 = vmul.f32 %v195, %v195
  %v295 = vmul.f32 %v198, %v198
  %v296 = vmul.f32 %v203, %v203
  %v297 = vmul.f32 %v206, %v206
  %v298 = vmul.f32 %v211, %v211
  %v299 = vmul.f32 %v214, %v214
  %v300 = vmul.f32 %v219, %v219
  %v301 = vmul.f32 %v222, %v222
  %v302 = vmul.f32 %v227, %v227
  %v303 = vmul.f32 %v230, %v230
  %v304 = vmul.f32 %v235, %v235
  %v305 = vmul.f32 %v238, %v238
  %v306 = vmul.f32 %v243, %v243
  %v307 = vmul.f32 %v246, %v246
  %v308 = vadd.f32 %v292, %v293
  %v309 = vadd.f32 %v308, %v294
  %v310 = vadd.f32 %v309, %v295
  %v311 = vadd.f32 %v310, %v296
  %v312 = vadd.f32 %v311, %v297
  %v313 = vadd.f32 %v312, %v298
  %v314 = vadd.f32 %v313, %v299
  %v315 = vadd.f32 %v314, %v300
  %v316 = vadd.f32 %v315, %v301
  %v317 = vadd.f32 %v316, %v302
  %v318 = vadd.f32 %v317, %v303
  %v319 = vadd.f32 %v318, %v304
  %v320 = vadd.f32 %v319, %v305
  %v321 = vadd.f32 %v320, %v306
  %v322 = vadd.f32 %v321, %v307
  %v323 = vrot.slane %v322, 4
  %v324 = vadd.f32 %v322, %v323
  %v325 = vrot.slane %v324, 2
  %v326 = vadd.f32 %v324, %v325
  %v327 = vrot.slane %v326, 1
  %v328 = vadd.f32 %v326, %v327
  %v329 = vadd.f32 %v291, %v328
  %330 = vst [vmem:[#allocation4] sm:$0x1] %v329
  // Predicated region
  $region22: #{reference_encoder_forward.3} parent=0 // pred_check
    %p331 = pneg %p18
  $region23: #{reference_encoder_forward.3} parent=0 // pred_check_branch
    %333 = sbr.rel (%p331) target = $region25
  $region24: #{reference_encoder_forward.3} parent=0 // pred_region
    %v334 = vld [vmem:[#allocation3] sm:$0x1]
    %v335 = vmul.f32 %v334, 0.010204081
    %v336 = vld [vmem:[#allocation4] sm:$0x1]
    %v337 = vmul.f32 %v336, 0.010204081
    %v338 = vmul.f32 %v335, %v335
    %v339 = vsub.f32 %v337, %v338
    %v340 = vmax.f32 %v339, 0.0
    %v341 = vld [vmem:[%s2] sm:$0x1]
    %v342 = vadd.f32 %v340, 1e-05
    %v343 = vrsqrt.pop %v342
    %v344 = vmul.f32 %v341, %v343
    %v345 = vld [vmem:[%s3] sm:$0x1]
    %v346 = vmul.f32 %v335, %v344
    %v347 = vsub.f32 %v345, %v346
    %v348 = vld [vmem:[#allocation2] sm:$0xff]
    %v349 = vld [vmem:[#allocation2 + $0x8] sm:$0xff]
    %v350 = vld [vmem:[#allocation2 + $0x10] sm:$0xff]
    %v351 = vld [vmem:[#allocation2 + $0x18] sm:$0xff]
    %v352 = vld [vmem:[#allocation2 + $0x20] sm:$0xff]
    %v353 = vld [vmem:[#allocation2 + $0x28] sm:$0xff]
    %v354 = vld [vmem:[#allocation2 + $0x30] sm:$0xff]
    %v355 = vld [vmem:[#allocation2 + $0x38] sm:$0xff]
    %v356 = vld [vmem:[#allocation2 + $0x40] sm:$0xff]
    %v357 = vld [vmem:[#allocation2 + $0x48] sm:$0xff]
    %v358 = vld [vmem:[#allocation2 + $0x50] sm:$0xff]
    %v359 = vld [vmem:[#allocation2 + $0x58] sm:$0xff]
    %v360 = vld [vmem:[#allocation2 + $0x60] sm:$0xff]
    %v361 = vld [vmem:[#allocation2 + $0x68] sm:$0xff]
    %v362 = vld [vmem:[#allocation2 + $0x70] sm:$0xff]
    %v363 = vld [vmem:[#allocation2 + $0x78] sm:$0xff]
    %v365 = vlaneseq
    %v366 = vshrl.u32 %v365, 7
    %v367 = vsub.s32 0, %v366
    %v368 = vrot.slane %v344, %v367
    %v370 = vmul.f32 %v348, %v368
    %v371 = vmul.f32 %v349, %v368
    %v372 = vmul.f32 %v350, %v368
    %v373 = vmul.f32 %v351, %v368
    %v374 = vmul.f32 %v352, %v368
    %v375 = vmul.f32 %v353, %v368
    %v376 = vmul.f32 %v354, %v368
    %v377 = vmul.f32 %v355, %v368
    %v378 = vmul.f32 %v356, %v368
    %v379 = vmul.f32 %v357, %v368
    %v380 = vmul.f32 %v358, %v368
    %v381 = vmul.f32 %v359, %v368
    %v382 = vmul.f32 %v360, %v368
    %v383 = vmul.f32 %v361, %v368
    %v384 = vmul.f32 %v362, %v368
    %v385 = vmul.f32 %v363, %v368
    %v387 = vlaneseq
    %v388 = vshrl.u32 %v387, 7
    %v389 = vsub.s32 0, %v388
    %v390 = vrot.slane %v347, %v389
    %v392 = vadd.f32 %v370, %v390
    %v393 = vadd.f32 %v371, %v390
    %v394 = vadd.f32 %v372, %v390
    %v395 = vadd.f32 %v373, %v390
    %v396 = vadd.f32 %v374, %v390
    %v397 = vadd.f32 %v375, %v390
    %v398 = vadd.f32 %v376, %v390
    %v399 = vadd.f32 %v377, %v390
    %v400 = vadd.f32 %v378, %v390
    %v401 = vadd.f32 %v379, %v390
    %v402 = vadd.f32 %v380, %v390
    %v403 = vadd.f32 %v381, %v390
    %v404 = vadd.f32 %v382, %v390
    %v405 = vadd.f32 %v383, %v390
    %v406 = vadd.f32 %v384, %v390
    %v407 = vadd.f32 %v385, %v390
    %v408 = vmax.f32 %v392, 0.0
    %v409 = vmax.f32 %v393, 0.0
    %v410 = vmax.f32 %v394, 0.0
    %v411 = vmax.f32 %v395, 0.0
    %v412 = vmax.f32 %v396, 0.0
    %v413 = vmax.f32 %v397, 0.0
    %v414 = vmax.f32 %v398, 0.0
    %v415 = vmax.f32 %v399, 0.0
    %v416 = vmax.f32 %v400, 0.0
    %v417 = vmax.f32 %v401, 0.0
    %v418 = vmax.f32 %v402, 0.0
    %v419 = vmax.f32 %v403, 0.0
    %v420 = vmax.f32 %v404, 0.0
    %v421 = vmax.f32 %v405, 0.0
    %v422 = vmax.f32 %v406, 0.0
    %v423 = vmax.f32 %v407, 0.0
    %v424 = vpack.c.bf16 %v409, %v408
    %v425 = vpack.c.bf16 %v411, %v410
    %v426 = vpack.c.bf16 %v413, %v412
    %v427 = vpack.c.bf16 %v415, %v414
    %v428 = vpack.c.bf16 %v417, %v416
    %v429 = vpack.c.bf16 %v419, %v418
    %v430 = vpack.c.bf16 %v421, %v420
    %v431 = vpack.c.bf16 %v423, %v422
    %v440 = vunpack.c.l.b16 %v424
    %v441 = vunpack.c.h.b16 %v424
    %v442 = vunpack.c.l.b16 %v425
    %v443 = vunpack.c.h.b16 %v425
    %v444 = vunpack.c.l.b16 %v426
    %v445 = vunpack.c.h.b16 %v426
    %v446 = vunpack.c.l.b16 %v427
    %v447 = vunpack.c.h.b16 %v427
    %v448 = vunpack.c.l.b16 %v428
    %v449 = vunpack.c.h.b16 %v428
    %v450 = vunpack.c.l.b16 %v429
    %v451 = vunpack.c.h.b16 %v429
    %v452 = vunpack.c.l.b16 %v430
    %v453 = vunpack.c.h.b16 %v430
    %v454 = vunpack.c.l.b16 %v431
    %v455 = vunpack.c.h.b16 %v431
    %v456 = vpack.c.b16 %v440, %v440
    %v457 = vpack.c.b16 %v441, %v441
    %v458 = vpack.c.b16 %v442, %v442
    %v459 = vpack.c.b16 %v443, %v443
    %v460 = vpack.c.b16 %v444, %v444
    %v461 = vpack.c.b16 %v445, %v445
    %v462 = vpack.c.b16 %v446, %v446
    %v463 = vpack.c.b16 %v447, %v447
    %v464 = vpack.c.b16 %v448, %v448
    %v465 = vpack.c.b16 %v449, %v449
    %v466 = vpack.c.b16 %v450, %v450
    %v467 = vpack.c.b16 %v451, %v451
    %v468 = vpack.c.b16 %v452, %v452
    %v469 = vpack.c.b16 %v453, %v453
    %v470 = vpack.c.b16 %v454, %v454
    %v471 = vpack.c.b16 %v455, %v455
    %488 = vst [vmem:[%s4] sm:$0xf] %v456
    %489 = vst [vmem:[%s4 + $0x4] sm:$0xf] %v457
    %490 = vst [vmem:[%s4 + $0x8] sm:$0xf] %v458
    %491 = vst [vmem:[%s4 + $0xc] sm:$0xf] %v459
    %492 = vst [vmem:[%s4 + $0x10] sm:$0xf] %v460
    %493 = vst [vmem:[%s4 + $0x14] sm:$0xf] %v461
    %494 = vst [vmem:[%s4 + $0x18] sm:$0xf] %v462
    %495 = vst [vmem:[%s4 + $0x1c] sm:$0xf] %v463
    %496 = vst [vmem:[%s4 + $0x20] sm:$0xf] %v464
    %497 = vst [vmem:[%s4 + $0x24] sm:$0xf] %v465
    %498 = vst [vmem:[%s4 + $0x28] sm:$0xf] %v466
    %499 = vst [vmem:[%s4 + $0x2c] sm:$0xf] %v467
    %500 = vst [vmem:[%s4 + $0x30] sm:$0xf] %v468
    %501 = vst [vmem:[%s4 + $0x34] sm:$0xf] %v469
    %502 = vst [vmem:[%s4 + $0x38] sm:$0xf] %v470
    %503 = vst [vmem:[%s4 + $0x3c] sm:$0xf] %v471
  $region25: #{reference_encoder_forward.3} parent=0 // pred_fallthru
    _
  // Predicated region
  $region26: #{reference_encoder_forward.3} parent=0 // pred_check
    _
  $region27: #{reference_encoder_forward.3} parent=0 // pred_check_branch
    %505 = sbr.rel (0) target = $region29
  $region28: #{reference_encoder_forward.3} parent=0 // pred_region
    _
  $region29: #{reference_encoder_forward.3} parent=0 // pred_fallthru
    _
  // Predicated region
  $region30: #{reference_encoder_forward.3} parent=0 // pred_check
    _
  $region31: #{reference_encoder_forward.3} parent=0 // pred_check_branch
    %507 = sbr.rel (0) target = $region33
  $region32: #{reference_encoder_forward.3} parent=0 // pred_region
    _
  $region33: #{reference_encoder_forward.3} parent=0 // pred_fallthru
    _

// kernel: reference_encoder_forward.4
$region0: #{reference_encoder_forward.4}
  #allocation0 [shape = 'u32[]', space=smem, size = 0x4, offset = 0x4, fixed_abs, tag = 'smem constant byte address 0x4 - core index']
  #allocation1 [shape = 'u32[144,128]{1,0:T(1,128)}', space=vmem, size = 0x12000, scoped, tag = 'internal scratch']
  #allocation2 [shape = 'f32[32,128]{1,0:T(8,128)}', space=vmem, size = 0x4000, scoped, tag = 'scratch operand']
  #allocation3 [shape = 'f32[1,128]{1,0:T(1,128)}', space=vmem, size = 0x200, scoped, tag = 'scratch operand']
  #allocation4 [shape = 'f32[1,128]{1,0:T(1,128)}', space=vmem, size = 0x200, scoped, tag = 'scratch operand']
  %s0 = inlined_call_operand.vmem [shape: bf16[32,1152], index: 0, kind: input, shape index: {}]
  %s1 = inlined_call_operand.vmem [shape: bf16[1152,128], index: 1, kind: input, shape index: {}]
  %s2 = inlined_call_operand.vmem [shape: f32[1,128], index: 2, kind: input, shape index: {}]
  %s3 = inlined_call_operand.vmem [shape: f32[1,128], index: 3, kind: input, shape index: {}]
  %s4 = inlined_call_operand.vmem [shape: bf16[32,128], index: 4, kind: output, shape index: {}]
  %s5 = sld [smem:[#allocation0]]
  $region34: #{reference_encoder_forward.4} parent=0
    _
  %s7 = ssub.s32 1, %s5
  %s8 = scalar_select 0, %s7, %s5
  // Predicated region
  $region2: #{reference_encoder_forward.4} parent=0 // pred_check
    _
  $region3: #{reference_encoder_forward.4} parent=0 // pred_check_branch
    %10 = sbr.rel (0) target = $region5
  $region4: #{reference_encoder_forward.4} parent=0 // pred_region
    _
  $region5: #{reference_encoder_forward.4} parent=0 // pred_fallthru
    _
  // Predicated region
  $region6: #{reference_encoder_forward.4} parent=0 // pred_check
    _
  $region7: #{reference_encoder_forward.4} parent=0 // pred_check_branch
    %12 = sbr.rel (0) target = $region9
  $region8: #{reference_encoder_forward.4} parent=0 // pred_region
    _
  $region9: #{reference_encoder_forward.4} parent=0 // pred_fallthru
    _
  // Predicated region
  $region10: #{reference_encoder_forward.4} parent=0 // pred_check
    _
  $region11: #{reference_encoder_forward.4} parent=0 // pred_check_branch
    %14 = sbr.rel (0) target = $region13
  $region12: #{reference_encoder_forward.4} parent=0 // pred_region
    _
  $region13: #{reference_encoder_forward.4} parent=0 // pred_fallthru
    _
  // Predicated region
  $region14: #{reference_encoder_forward.4} parent=0 // pred_check
    _
  $region15: #{reference_encoder_forward.4} parent=0 // pred_check_branch
    %16 = sbr.rel (0) target = $region17
  $region16: #{reference_encoder_forward.4} parent=0 // pred_region
    _
  $region17: #{reference_encoder_forward.4} parent=0 // pred_fallthru
    _
  %p18 = scmp.eq.s32.totalorder 0, 0
  // Predicated region
  $region18: #{reference_encoder_forward.4} parent=0 // pred_check
    %p19 = pneg %p18
  $region19: #{reference_encoder_forward.4} parent=0 // pred_check_branch
    %21 = sbr.rel (%p19) target = $region21
  $region20: #{reference_encoder_forward.4} parent=0 // pred_region
    %22 = vst [vmem:[#allocation3] sm:$0x1] 0.0
    %23 = vst [vmem:[#allocation4] sm:$0x1] 0.0
  $region21: #{reference_encoder_forward.4} parent=0 // pred_fallthru
    _
  %v24 = vld [vmem:[%s0] sm:$0xff]
  %v25 = vld [vmem:[%s0 + $0x8] sm:$0xff]
  %v26 = vld [vmem:[%s0 + $0x10] sm:$0xff]
  %v27 = vld [vmem:[%s0 + $0x18] sm:$0xff]
  %v28 = vld [vmem:[%s0 + $0x20] sm:$0xf]
  %v29 = vld [vmem:[%s0 + $0x24] sm:$0xff]
  %v30 = vld [vmem:[%s0 + $0x2c] sm:$0xff]
  %v31 = vld [vmem:[%s0 + $0x34] sm:$0xff]
  %v32 = vld [vmem:[%s0 + $0x3c] sm:$0xff]
  %v33 = vld [vmem:[%s0 + $0x44] sm:$0xf]
  %v34 = vld [vmem:[%s0 + $0x48] sm:$0xff]
  %v35 = vld [vmem:[%s0 + $0x50] sm:$0xff]
  %v36 = vld [vmem:[%s0 + $0x58] sm:$0xff]
  %v37 = vld [vmem:[%s0 + $0x60] sm:$0xff]
  %v38 = vld [vmem:[%s0 + $0x68] sm:$0xf]
  %v39 = vld [vmem:[%s0 + $0x6c] sm:$0xff]
  %v40 = vld [vmem:[%s0 + $0x74] sm:$0xff]
  %v41 = vld [vmem:[%s0 + $0x7c] sm:$0xff]
  %v42 = vld [vmem:[%s0 + $0x84] sm:$0xff]
  %v43 = vld [vmem:[%s0 + $0x8c] sm:$0xf]
  %v44 = vld [vmem:[%s1] sm:$0xf]
  %v45 = vld [vmem:[%s1 + $0x4] sm:$0xf]
  %v46 = vld [vmem:[%s1 + $0x8] sm:$0xf]
  %v47 = vld [vmem:[%s1 + $0xc] sm:$0xf]
  %v48 = vld [vmem:[%s1 + $0x10] sm:$0xf]
  %v49 = vld [vmem:[%s1 + $0x14] sm:$0xf]
  %v50 = vld [vmem:[%s1 + $0x18] sm:$0xf]
  %v51 = vld [vmem:[%s1 + $0x1c] sm:$0xf]
  %v52 = vld [vmem:[%s1 + $0x20] sm:$0xf]
  %v53 = vld [vmem:[%s1 + $0x24] sm:$0xf]
  %v54 = vld [vmem:[%s1 + $0x28] sm:$0xf]
  %v55 = vld [vmem:[%s1 + $0x2c] sm:$0xf]
  %v56 = vld [vmem:[%s1 + $0x30] sm:$0xf]
  %v57 = vld [vmem:[%s1 + $0x34] sm:$0xf]
  %v58 = vld [vmem:[%s1 + $0x38] sm:$0xf]
  %v59 = vld [vmem:[%s1 + $0x3c] sm:$0xf]
  %v60 = vld [vmem:[%s1 + $0x40] sm:$0xf]
  %v61 = vld [vmem:[%s1 + $0x44] sm:$0xf]
  %v62 = vld [vmem:[%s1 + $0x48] sm:$0xf]
  %v63 = vld [vmem:[%s1 + $0x4c] sm:$0xf]
  %v64 = vld [vmem:[%s1 + $0x50] sm:$0xf]
  %v65 = vld [vmem:[%s1 + $0x54] sm:$0xf]
  %v66 = vld [vmem:[%s1 + $0x58] sm:$0xf]
  %v67 = vld [vmem:[%s1 + $0x5c] sm:$0xf]
  %v68 = vld [vmem:[%s1 + $0x60] sm:$0xf]
  %v69 = vld [vmem:[%s1 + $0x64] sm:$0xf]
  %v70 = vld [vmem:[%s1 + $0x68] sm:$0xf]
  %v71 = vld [vmem:[%s1 + $0x6c] sm:$0xf]
  %v72 = vld [vmem:[%s1 + $0x70] sm:$0xf]
  %v73 = vld [vmem:[%s1 + $0x74] sm:$0xf]
  %v74 = vld [vmem:[%s1 + $0x78] sm:$0xf]
  %v75 = vld [vmem:[%s1 + $0x7c] sm:$0xf]
  %v76 = vld [vmem:[%s1 + $0x80] sm:$0xf]
  %v77 = vld [vmem:[%s1 + $0x84] sm:$0xf]
  %v78 = vld [vmem:[%s1 + $0x88] sm:$0xf]
  %v79 = vld [vmem:[%s1 + $0x8c] sm:$0xf]
  %v80 = vld [vmem:[%s1 + $0x90] sm:$0xf]
  %v81 = vld [vmem:[%s1 + $0x94] sm:$0xf]
  %v82 = vld [vmem:[%s1 + $0x98] sm:$0xf]
  %v83 = vld [vmem:[%s1 + $0x9c] sm:$0xf]
  %v84 = vld [vmem:[%s1 + $0xa0] sm:$0xf]
  %v85 = vld [vmem:[%s1 + $0xa4] sm:$0xf]
  %v86 = vld [vmem:[%s1 + $0xa8] sm:$0xf]
  %v87 = vld [vmem:[%s1 + $0xac] sm:$0xf]
  %v88 = vld [vmem:[%s1 + $0xb0] sm:$0xf]
  %v89 = vld [vmem:[%s1 + $0xb4] sm:$0xf]
  %v90 = vld [vmem:[%s1 + $0xb8] sm:$0xf]
  %v91 = vld [vmem:[%s1 + $0xbc] sm:$0xf]
  %v92 = vld [vmem:[%s1 + $0xc0] sm:$0xf]
  %v93 = vld [vmem:[%s1 + $0xc4] sm:$0xf]
  %v94 = vld [vmem:[%s1 + $0xc8] sm:$0xf]
  %v95 = vld [vmem:[%s1 + $0xcc] sm:$0xf]
  %v96 = vld [vmem:[%s1 + $0xd0] sm:$0xf]
  %v97 = vld [vmem:[%s1 + $0xd4] sm:$0xf]
  %v98 = vld [vmem:[%s1 + $0xd8] sm:$0xf]
  %v99 = vld [vmem:[%s1 + $0xdc] sm:$0xf]
  %v100 = vld [vmem:[%s1 + $0xe0] sm:$0xf]
  %v101 = vld [vmem:[%s1 + $0xe4] sm:$0xf]
  %v102 = vld [vmem:[%s1 + $0xe8] sm:$0xf]
  %v103 = vld [vmem:[%s1 + $0xec] sm:$0xf]
  %v104 = vld [vmem:[%s1 + $0xf0] sm:$0xf]
  %v105 = vld [vmem:[%s1 + $0xf4] sm:$0xf]
  %v106 = vld [vmem:[%s1 + $0xf8] sm:$0xf]
  %v107 = vld [vmem:[%s1 + $0xfc] sm:$0xf]
  %v108 = vld [vmem:[%s1 + $0x100] sm:$0xf]
  %v109 = vld [vmem:[%s1 + $0x104] sm:$0xf]
  %v110 = vld [vmem:[%s1 + $0x108] sm:$0xf]
  %v111 = vld [vmem:[%s1 + $0x10c] sm:$0xf]
  %v112 = vld [vmem:[%s1 + $0x110] sm:$0xf]
  %v113 = vld [vmem:[%s1 + $0x114] sm:$0xf]
  %v114 = vld [vmem:[%s1 + $0x118] sm:$0xf]
  %v115 = vld [vmem:[%s1 + $0x11c] sm:$0xf]
  %v116 = vld [vmem:[%s1 + $0x120] sm:$0xf]
  %v117 = vld [vmem:[%s1 + $0x124] sm:$0xf]
  %v118 = vld [vmem:[%s1 + $0x128] sm:$0xf]
  %v119 = vld [vmem:[%s1 + $0x12c] sm:$0xf]
  %v120 = vld [vmem:[%s1 + $0x130] sm:$0xf]
  %v121 = vld [vmem:[%s1 + $0x134] sm:$0xf]
  %v122 = vld [vmem:[%s1 + $0x138] sm:$0xf]
  %v123 = vld [vmem:[%s1 + $0x13c] sm:$0xf]
  %v124 = vld [vmem:[%s1 + $0x140] sm:$0xf]
  %v125 = vld [vmem:[%s1 + $0x144] sm:$0xf]
  %v126 = vld [vmem:[%s1 + $0x148] sm:$0xf]
  %v127 = vld [vmem:[%s1 + $0x14c] sm:$0xf]
  %v128 = vld [vmem:[%s1 + $0x150] sm:$0xf]
  %v129 = vld [vmem:[%s1 + $0x154] sm:$0xf]
  %v130 = vld [vmem:[%s1 + $0x158] sm:$0xf]
  %v131 = vld [vmem:[%s1 + $0x15c] sm:$0xf]
  %v132 = vld [vmem:[%s1 + $0x160] sm:$0xf]
  %v133 = vld [vmem:[%s1 + $0x164] sm:$0xf]
  %v134 = vld [vmem:[%s1 + $0x168] sm:$0xf]
  %v135 = vld [vmem:[%s1 + $0x16c] sm:$0xf]
  %v136 = vld [vmem:[%s1 + $0x170] sm:$0xf]
  %v137 = vld [vmem:[%s1 + $0x174] sm:$0xf]
  %v138 = vld [vmem:[%s1 + $0x178] sm:$0xf]
  %v139 = vld [vmem:[%s1 + $0x17c] sm:$0xf]
  %v140 = vld [vmem:[%s1 + $0x180] sm:$0xf]
  %v141 = vld [vmem:[%s1 + $0x184] sm:$0xf]
  %v142 = vld [vmem:[%s1 + $0x188] sm:$0xf]
  %v143 = vld [vmem:[%s1 + $0x18c] sm:$0xf]
  %v144 = vld [vmem:[%s1 + $0x190] sm:$0xf]
  %v145 = vld [vmem:[%s1 + $0x194] sm:$0xf]
  %v146 = vld [vmem:[%s1 + $0x198] sm:$0xf]
  %v147 = vld [vmem:[%s1 + $0x19c] sm:$0xf]
  %v148 = vld [vmem:[%s1 + $0x1a0] sm:$0xf]
  %v149 = vld [vmem:[%s1 + $0x1a4] sm:$0xf]
  %v150 = vld [vmem:[%s1 + $0x1a8] sm:$0xf]
  %v151 = vld [vmem:[%s1 + $0x1ac] sm:$0xf]
  %v152 = vld [vmem:[%s1 + $0x1b0] sm:$0xf]
  %v153 = vld [vmem:[%s1 + $0x1b4] sm:$0xf]
  %v154 = vld [vmem:[%s1 + $0x1b8] sm:$0xf]
  %v155 = vld [vmem:[%s1 + $0x1bc] sm:$0xf]
  %v156 = vld [vmem:[%s1 + $0x1c0] sm:$0xf]
  %v157 = vld [vmem:[%s1 + $0x1c4] sm:$0xf]
  %v158 = vld [vmem:[%s1 + $0x1c8] sm:$0xf]
  %v159 = vld [vmem:[%s1 + $0x1cc] sm:$0xf]
  %v160 = vld [vmem:[%s1 + $0x1d0] sm:$0xf]
  %v161 = vld [vmem:[%s1 + $0x1d4] sm:$0xf]
  %v162 = vld [vmem:[%s1 + $0x1d8] sm:$0xf]
  %v163 = vld [vmem:[%s1 + $0x1dc] sm:$0xf]
  %v164 = vld [vmem:[%s1 + $0x1e0] sm:$0xf]
  %v165 = vld [vmem:[%s1 + $0x1e4] sm:$0xf]
  %v166 = vld [vmem:[%s1 + $0x1e8] sm:$0xf]
  %v167 = vld [vmem:[%s1 + $0x1ec] sm:$0xf]
  %v168 = vld [vmem:[%s1 + $0x1f0] sm:$0xf]
  %v169 = vld [vmem:[%s1 + $0x1f4] sm:$0xf]
  %v170 = vld [vmem:[%s1 + $0x1f8] sm:$0xf]
  %v171 = vld [vmem:[%s1 + $0x1fc] sm:$0xf]
  %v172 = vld [vmem:[%s1 + $0x200] sm:$0xf]
  %v173 = vld [vmem:[%s1 + $0x204] sm:$0xf]
  %v174 = vld [vmem:[%s1 + $0x208] sm:$0xf]
  %v175 = vld [vmem:[%s1 + $0x20c] sm:$0xf]
  %v176 = vld [vmem:[%s1 + $0x210] sm:$0xf]
  %v177 = vld [vmem:[%s1 + $0x214] sm:$0xf]
  %v178 = vld [vmem:[%s1 + $0x218] sm:$0xf]
  %v179 = vld [vmem:[%s1 + $0x21c] sm:$0xf]
  %v180 = vld [vmem:[%s1 + $0x220] sm:$0xf]
  %v181 = vld [vmem:[%s1 + $0x224] sm:$0xf]
  %v182 = vld [vmem:[%s1 + $0x228] sm:$0xf]
  %v183 = vld [vmem:[%s1 + $0x22c] sm:$0xf]
  %v184 = vld [vmem:[%s1 + $0x230] sm:$0xf]
  %v185 = vld [vmem:[%s1 + $0x234] sm:$0xf]
  %v186 = vld [vmem:[%s1 + $0x238] sm:$0xf]
  %v187 = vld [vmem:[%s1 + $0x23c] sm:$0xf]
  %v208 = vunpack.c.l.b16 %v24
  %v209 = vunpack.c.h.b16 %v24
  %v210 = vunpack.c.l.b16 %v25
  %v211 = vunpack.c.h.b16 %v25
  %v212 = vunpack.c.l.b16 %v26
  %v213 = vunpack.c.h.b16 %v26
  %v214 = vunpack.c.l.b16 %v27
  %v215 = vunpack.c.h.b16 %v27
  %v216 = vunpack.c.l.b16 %v28
  %v217 = vunpack.c.l.b16 %v29
  %v218 = vunpack.c.h.b16 %v29
  %v219 = vunpack.c.l.b16 %v30
  %v220 = vunpack.c.h.b16 %v30
  %v221 = vunpack.c.l.b16 %v31
  %v222 = vunpack.c.h.b16 %v31
  %v223 = vunpack.c.l.b16 %v32
  %v224 = vunpack.c.h.b16 %v32
  %v225 = vunpack.c.l.b16 %v33
  %v226 = vunpack.c.l.b16 %v34
  %v227 = vunpack.c.h.b16 %v34
  %v228 = vunpack.c.l.b16 %v35
  %v229 = vunpack.c.h.b16 %v35
  %v230 = vunpack.c.l.b16 %v36
  %v231 = vunpack.c.h.b16 %v36
  %v232 = vunpack.c.l.b16 %v37
  %v233 = vunpack.c.h.b16 %v37
  %v234 = vunpack.c.l.b16 %v38
  %v235 = vunpack.c.l.b16 %v39
  %v236 = vunpack.c.h.b16 %v39
  %v237 = vunpack.c.l.b16 %v40
  %v238 = vunpack.c.h.b16 %v40
  %v239 = vunpack.c.l.b16 %v41
  %v240 = vunpack.c.h.b16 %v41
  %v241 = vunpack.c.l.b16 %v42
  %v242 = vunpack.c.h.b16 %v42
  %v243 = vunpack.c.l.b16 %v43
  %v244 = vpack.c.b16 %v217, %v208
  %v245 = vpack.c.b16 %v218, %v209
  %v246 = vpack.c.b16 %v219, %v210
  %v247 = vpack.c.b16 %v220, %v211
  %v248 = vpack.c.b16 %v221, %v212
  %v249 = vpack.c.b16 %v222, %v213
  %v250 = vpack.c.b16 %v223, %v214
  %v251 = vpack.c.b16 %v224, %v215
  %v252 = vpack.c.b16 %v225, %v216
  %v253 = vpack.c.b16 %v235, %v226
  %v254 = vpack.c.b16 %v236, %v227
  %v255 = vpack.c.b16 %v237, %v228
  %v256 = vpack.c.b16 %v238, %v229
  %v257 = vpack.c.b16 %v239, %v230
  %v258 = vpack.c.b16 %v240, %v231
  %v259 = vpack.c.b16 %v241, %v232
  %v260 = vpack.c.b16 %v242, %v233
  %v261 = vpack.c.b16 %v243, %v234
  %v424 = vunpack.c.l.b16 %v44
  %v425 = vunpack.c.l.b16 %v45
  %v426 = vunpack.c.l.b16 %v46
  %v427 = vunpack.c.l.b16 %v47
  %v428 = vunpack.c.l.b16 %v48
  %v429 = vunpack.c.l.b16 %v49
  %v430 = vunpack.c.l.b16 %v50
  %v431 = vunpack.c.l.b16 %v51
  %v432 = vunpack.c.l.b16 %v52
  %v433 = vunpack.c.l.b16 %v53
  %v434 = vunpack.c.l.b16 %v54
  %v435 = vunpack.c.l.b16 %v55
  %v436 = vunpack.c.l.b16 %v56
  %v437 = vunpack.c.l.b16 %v57
  %v438 = vunpack.c.l.b16 %v58
  %v439 = vunpack.c.l.b16 %v59
  %v440 = vunpack.c.l.b16 %v60
  %v441 = vunpack.c.l.b16 %v61
  %v442 = vunpack.c.l.b16 %v62
  %v443 = vunpack.c.l.b16 %v63
  %v444 = vunpack.c.l.b16 %v64
  %v445 = vunpack.c.l.b16 %v65
  %v446 = vunpack.c.l.b16 %v66
  %v447 = vunpack.c.l.b16 %v67
  %v448 = vunpack.c.l.b16 %v68
  %v449 = vunpack.c.l.b16 %v69
  %v450 = vunpack.c.l.b16 %v70
  %v451 = vunpack.c.l.b16 %v71
  %v452 = vunpack.c.l.b16 %v72
  %v453 = vunpack.c.l.b16 %v73
  %v454 = vunpack.c.l.b16 %v74
  %v455 = vunpack.c.l.b16 %v75
  %v456 = vunpack.c.l.b16 %v76
  %v457 = vunpack.c.l.b16 %v77
  %v458 = vunpack.c.l.b16 %v78
  %v459 = vunpack.c.l.b16 %v79
  %v460 = vunpack.c.l.b16 %v80
  %v461 = vunpack.c.l.b16 %v81
  %v462 = vunpack.c.l.b16 %v82
  %v463 = vunpack.c.l.b16 %v83
  %v464 = vunpack.c.l.b16 %v84
  %v465 = vunpack.c.l.b16 %v85
  %v466 = vunpack.c.l.b16 %v86
  %v467 = vunpack.c.l.b16 %v87
  %v468 = vunpack.c.l.b16 %v88
  %v469 = vunpack.c.l.b16 %v89
  %v470 = vunpack.c.l.b16 %v90
  %v471 = vunpack.c.l.b16 %v91
  %v472 = vunpack.c.l.b16 %v92
  %v473 = vunpack.c.l.b16 %v93
  %v474 = vunpack.c.l.b16 %v94
  %v475 = vunpack.c.l.b16 %v95
  %v476 = vunpack.c.l.b16 %v96
  %v477 = vunpack.c.l.b16 %v97
  %v478 = vunpack.c.l.b16 %v98
  %v479 = vunpack.c.l.b16 %v99
  %v480 = vunpack.c.l.b16 %v100
  %v481 = vunpack.c.l.b16 %v101
  %v482 = vunpack.c.l.b16 %v102
  %v483 = vunpack.c.l.b16 %v103
  %v484 = vunpack.c.l.b16 %v104
  %v485 = vunpack.c.l.b16 %v105
  %v486 = vunpack.c.l.b16 %v106
  %v487 = vunpack.c.l.b16 %v107
  %v488 = vunpack.c.l.b16 %v108
  %v489 = vunpack.c.l.b16 %v109
  %v490 = vunpack.c.l.b16 %v110
  %v491 = vunpack.c.l.b16 %v111
  %v492 = vunpack.c.l.b16 %v112
  %v493 = vunpack.c.l.b16 %v113
  %v494 = vunpack.c.l.b16 %v114
  %v495 = vunpack.c.l.b16 %v115
  %v496 = vunpack.c.l.b16 %v116
  %v497 = vunpack.c.l.b16 %v117
  %v498 = vunpack.c.l.b16 %v118
  %v499 = vunpack.c.l.b16 %v119
  %v500 = vunpack.c.l.b16 %v120
  %v501 = vunpack.c.l.b16 %v121
  %v502 = vunpack.c.l.b16 %v122
  %v503 = vunpack.c.l.b16 %v123
  %v504 = vunpack.c.l.b16 %v124
  %v505 = vunpack.c.l.b16 %v125
  %v506 = vunpack.c.l.b16 %v126
  %v507 = vunpack.c.l.b16 %v127
  %v508 = vunpack.c.l.b16 %v128
  %v509 = vunpack.c.l.b16 %v129
  %v510 = vunpack.c.l.b16 %v130
  %v511 = vunpack.c.l.b16 %v131
  %v512 = vunpack.c.l.b16 %v132
  %v513 = vunpack.c.l.b16 %v133
  %v514 = vunpack.c.l.b16 %v134
  %v515 = vunpack.c.l.b16 %v135
  %v516 = vunpack.c.l.b16 %v136
  %v517 = vunpack.c.l.b16 %v137
  %v518 = vunpack.c.l.b16 %v138
  %v519 = vunpack.c.l.b16 %v139
  %v520 = vunpack.c.l.b16 %v140
  %v521 = vunpack.c.l.b16 %v141
  %v522 = vunpack.c.l.b16 %v142
  %v523 = vunpack.c.l.b16 %v143
  %v524 = vunpack.c.l.b16 %v144
  %v525 = vunpack.c.l.b16 %v145
  %v526 = vunpack.c.l.b16 %v146
  %v527 = vunpack.c.l.b16 %v147
  %v528 = vunpack.c.l.b16 %v148
  %v529 = vunpack.c.l.b16 %v149
  %v530 = vunpack.c.l.b16 %v150
  %v531 = vunpack.c.l.b16 %v151
  %v532 = vunpack.c.l.b16 %v152
  %v533 = vunpack.c.l.b16 %v153
  %v534 = vunpack.c.l.b16 %v154
  %v535 = vunpack.c.l.b16 %v155
  %v536 = vunpack.c.l.b16 %v156
  %v537 = vunpack.c.l.b16 %v157
  %v538 = vunpack.c.l.b16 %v158
  %v539 = vunpack.c.l.b16 %v159
  %v540 = vunpack.c.l.b16 %v160
  %v541 = vunpack.c.l.b16 %v161
  %v542 = vunpack.c.l.b16 %v162
  %v543 = vunpack.c.l.b16 %v163
  %v544 = vunpack.c.l.b16 %v164
  %v545 = vunpack.c.l.b16 %v165
  %v546 = vunpack.c.l.b16 %v166
  %v547 = vunpack.c.l.b16 %v167
  %v548 = vunpack.c.l.b16 %v168
  %v549 = vunpack.c.l.b16 %v169
  %v550 = vunpack.c.l.b16 %v170
  %v551 = vunpack.c.l.b16 %v171
  %v552 = vunpack.c.l.b16 %v172
  %v553 = vunpack.c.l.b16 %v173
  %v554 = vunpack.c.l.b16 %v174
  %v555 = vunpack.c.l.b16 %v175
  %v556 = vunpack.c.l.b16 %v176
  %v557 = vunpack.c.l.b16 %v177
  %v558 = vunpack.c.l.b16 %v178
  %v559 = vunpack.c.l.b16 %v179
  %v560 = vunpack.c.l.b16 %v180
  %v561 = vunpack.c.l.b16 %v181
  %v562 = vunpack.c.l.b16 %v182
  %v563 = vunpack.c.l.b16 %v183
  %v564 = vunpack.c.l.b16 %v184
  %v565 = vunpack.c.l.b16 %v185
  %v566 = vunpack.c.l.b16 %v186
  %v567 = vunpack.c.l.b16 %v187
  %v568 = vpack.c.b16 %v425, %v424
  %v569 = vpack.c.b16 %v427, %v426
  %v570 = vpack.c.b16 %v429, %v428
  %v571 = vpack.c.b16 %v431, %v430
  %v572 = vpack.c.b16 %v433, %v432
  %v573 = vpack.c.b16 %v435, %v434
  %v574 = vpack.c.b16 %v437, %v436
  %v575 = vpack.c.b16 %v439, %v438
  %v576 = vpack.c.b16 %v441, %v440
  %v577 = vpack.c.b16 %v443, %v442
  %v578 = vpack.c.b16 %v445, %v444
  %v579 = vpack.c.b16 %v447, %v446
  %v580 = vpack.c.b16 %v449, %v448
  %v581 = vpack.c.b16 %v451, %v450
  %v582 = vpack.c.b16 %v453, %v452
  %v583 = vpack.c.b16 %v455, %v454
  %v584 = vpack.c.b16 %v457, %v456
  %v585 = vpack.c.b16 %v459, %v458
  %v586 = vpack.c.b16 %v461, %v460
  %v587 = vpack.c.b16 %v463, %v462
  %v588 = vpack.c.b16 %v465, %v464
  %v589 = vpack.c.b16 %v467, %v466
  %v590 = vpack.c.b16 %v469, %v468
  %v591 = vpack.c.b16 %v471, %v470
  %v592 = vpack.c.b16 %v473, %v472
  %v593 = vpack.c.b16 %v475, %v474
  %v594 = vpack.c.b16 %v477, %v476
  %v595 = vpack.c.b16 %v479, %v478
  %v596 = vpack.c.b16 %v481, %v480
  %v597 = vpack.c.b16 %v483, %v482
  %v598 = vpack.c.b16 %v485, %v484
  %v599 = vpack.c.b16 %v487, %v486
  %v600 = vpack.c.b16 %v489, %v488
  %v601 = vpack.c.b16 %v491, %v490
  %v602 = vpack.c.b16 %v493, %v492
  %v603 = vpack.c.b16 %v495, %v494
  %v604 = vpack.c.b16 %v497, %v496
  %v605 = vpack.c.b16 %v499, %v498
  %v606 = vpack.c.b16 %v501, %v500
  %v607 = vpack.c.b16 %v503, %v502
  %v608 = vpack.c.b16 %v505, %v504
  %v609 = vpack.c.b16 %v507, %v506
  %v610 = vpack.c.b16 %v509, %v508
  %v611 = vpack.c.b16 %v511, %v510
  %v612 = vpack.c.b16 %v513, %v512
  %v613 = vpack.c.b16 %v515, %v514
  %v614 = vpack.c.b16 %v517, %v516
  %v615 = vpack.c.b16 %v519, %v518
  %v616 = vpack.c.b16 %v521, %v520
  %v617 = vpack.c.b16 %v523, %v522
  %v618 = vpack.c.b16 %v525, %v524
  %v619 = vpack.c.b16 %v527, %v526
  %v620 = vpack.c.b16 %v529, %v528
  %v621 = vpack.c.b16 %v531, %v530
  %v622 = vpack.c.b16 %v533, %v532
  %v623 = vpack.c.b16 %v535, %v534
  %v624 = vpack.c.b16 %v537, %v536
  %v625 = vpack.c.b16 %v539, %v538
  %v626 = vpack.c.b16 %v541, %v540
  %v627 = vpack.c.b16 %v543, %v542
  %v628 = vpack.c.b16 %v545, %v544
  %v629 = vpack.c.b16 %v547, %v546
  %v630 = vpack.c.b16 %v549, %v548
  %v631 = vpack.c.b16 %v551, %v550
  %v632 = vpack.c.b16 %v553, %v552
  %v633 = vpack.c.b16 %v555, %v554
  %v634 = vpack.c.b16 %v557, %v556
  %v635 = vpack.c.b16 %v559, %v558
  %v636 = vpack.c.b16 %v561, %v560
  %v637 = vpack.c.b16 %v563, %v562
  %v638 = vpack.c.b16 %v565, %v564
  %v639 = vpack.c.b16 %v567, %v566
  %712 = vmatprep.subr.bf16.mxu0 0
  %713 = vmatpush1.bf16.msra.mxu0 %v568
  %714 = vmatprep.subr.bf16.mxu0 0
  %715 = vmatpush1.bf16.msra.mxu0 %v569
  %716 = vmatprep.subr.bf16.mxu0 0
  %717 = vmatpush1.bf16.msra.mxu0 %v570
  %718 = vmatprep.subr.bf16.mxu0 0
  %719 = vmatpush1.bf16.msra.mxu0 %v571
  %720 = vmatprep.subr.bf16.mxu0 0
  %721 = vmatpush1.bf16.msra.mxu0 %v572
  %722 = vmatprep.subr.bf16.mxu0 0
  %723 = vmatpush1.bf16.msra.mxu0 %v573
  %724 = vmatprep.subr.bf16.mxu0 0
  %725 = vmatpush1.bf16.msra.mxu0 %v574
  %726 = vmatprep.subr.bf16.mxu0 0
  %727 = vmatpush1.bf16.msra.mxu0 %v575
  %728 = vmatprep.subr.bf16.mxu0 0
  %729 = vmatpush1.bf16.msra.mxu0 %v576
  %730 = vmatprep.subr.bf16.mxu0 0
  %731 = vmatpush1.bf16.msra.mxu0 %v577
  %732 = vmatprep.subr.bf16.mxu0 0
  %733 = vmatpush1.bf16.msra.mxu0 %v578
  %734 = vmatprep.subr.bf16.mxu0 0
  %735 = vmatpush1.bf16.msra.mxu0 %v579
  %736 = vmatprep.subr.bf16.mxu0 0
  %737 = vmatpush1.bf16.msra.mxu0 %v580
  %738 = vmatprep.subr.bf16.mxu0 0
  %739 = vmatpush1.bf16.msra.mxu0 %v581
  %740 = vmatprep.subr.bf16.mxu0 0
  %741 = vmatpush1.bf16.msra.mxu0 %v582
  %742 = vmatprep.subr.bf16.mxu0 0
  %743 = vmatpush1.bf16.msra.mxu0 %v583
  %744 = vmatprep.mubr.bf16.mxu0 %v245
  %745 = vmatmul.mubr.bf16.gmra.mrb[0].mxu0 %v244
  %v746 = vpop.f32.mrb[0].mxu0
  %v747 = vadd.f32 0.0, %v746
  %v748 = vpop.f32.mrb[0].mxu0
  %v749 = vpop.f32.mrb[0].mxu0
  %v750 = vadd.f32 0.0, %v749
  %v751 = vpop.f32.mrb[0].mxu0
  %752 = vmatprep.mubr.bf16.mxu0 %v254
  %753 = vmatmul.mubr.bf16.gmra.mrb[0].mxu0 %v253
  %v754 = vpop.f32.mrb[0].mxu0
  %v755 = vadd.f32 0.0, %v754
  %v756 = vpop.f32.mrb[0].mxu0
  %v757 = vpop.f32.mrb[0].mxu0
  %v758 = vadd.f32 0.0, %v757
  %v759 = vpop.f32.mrb[0].mxu0
  %760 = vdwg.mxu0
  %761 = vmatprep.subr.bf16.mxu0 0
  %762 = vmatpush1.bf16.msra.mxu0 %v584
  %763 = vmatprep.subr.bf16.mxu0 0
  %764 = vmatpush1.bf16.msra.mxu0 %v585
  %765 = vmatprep.subr.bf16.mxu0 0
  %766 = vmatpush1.bf16.msra.mxu0 %v586
  %767 = vmatprep.subr.bf16.mxu0 0
  %768 = vmatpush1.bf16.msra.mxu0 %v587
  %769 = vmatprep.subr.bf16.mxu0 0
  %770 = vmatpush1.bf16.msra.mxu0 %v588
  %771 = vmatprep.subr.bf16.mxu0 0
  %772 = vmatpush1.bf16.msra.mxu0 %v589
  %773 = vmatprep.subr.bf16.mxu0 0
  %774 = vmatpush1.bf16.msra.mxu0 %v590
  %775 = vmatprep.subr.bf16.mxu0 0
  %776 = vmatpush1.bf16.msra.mxu0 %v591
  %777 = vmatprep.subr.bf16.mxu0 0
  %778 = vmatpush1.bf16.msra.mxu0 %v592
  %779 = vmatprep.subr.bf16.mxu0 0
  %780 = vmatpush1.bf16.msra.mxu0 %v593
  %781 = vmatprep.subr.bf16.mxu0 0
  %782 = vmatpush1.bf16.msra.mxu0 %v594
  %783 = vmatprep.subr.bf16.mxu0 0
  %784 = vmatpush1.bf16.msra.mxu0 %v595
  %785 = vmatprep.subr.bf16.mxu0 0
  %786 = vmatpush1.bf16.msra.mxu0 %v596
  %787 = vmatprep.subr.bf16.mxu0 0
  %788 = vmatpush1.bf16.msra.mxu0 %v597
  %789 = vmatprep.subr.bf16.mxu0 0
  %790 = vmatpush1.bf16.msra.mxu0 %v598
  %791 = vmatprep.subr.bf16.mxu0 0
  %792 = vmatpush1.bf16.msra.mxu0 %v599
  %793 = vmatprep.mubr.bf16.mxu0 %v247
  %794 = vmatmul.mubr.bf16.gmra.mrb[0].mxu0 %v246
  %v795 = vpop.f32.mrb[0].mxu0
  %v796 = vadd.f32 %v747, %v795
  %v797 = vpop.f32.mrb[0].mxu0
  %v798 = vpop.f32.mrb[0].mxu0
  %v799 = vadd.f32 %v750, %v798
  %v800 = vpop.f32.mrb[0].mxu0
  %801 = vmatprep.mubr.bf16.mxu0 %v256
  %802 = vmatmul.mubr.bf16.gmra.mrb[0].mxu0 %v255
  %v803 = vpop.f32.mrb[0].mxu0
  %v804 = vadd.f32 %v755, %v803
  %v805 = vpop.f32.mrb[0].mxu0
  %v806 = vpop.f32.mrb[0].mxu0
  %v807 = vadd.f32 %v758, %v806
  %v808 = vpop.f32.mrb[0].mxu0
  %809 = vdwg.mxu0
  %810 = vmatprep.subr.bf16.mxu0 0
  %811 = vmatpush1.bf16.msra.mxu0 %v600
  %812 = vmatprep.subr.bf16.mxu0 0
  %813 = vmatpush1.bf16.msra.mxu0 %v601
  %814 = vmatprep.subr.bf16.mxu0 0
  %815 = vmatpush1.bf16.msra.mxu0 %v602
  %816 = vmatprep.subr.bf16.mxu0 0
  %817 = vmatpush1.bf16.msra.mxu0 %v603
  %818 = vmatprep.subr.bf16.mxu0 0
  %819 = vmatpush1.bf16.msra.mxu0 %v604
  %820 = vmatprep.subr.bf16.mxu0 0
  %821 = vmatpush1.bf16.msra.mxu0 %v605
  %822 = vmatprep.subr.bf16.mxu0 0
  %823 = vmatpush1.bf16.msra.mxu0 %v606
  %824 = vmatprep.subr.bf16.mxu0 0
  %825 = vmatpush1.bf16.msra.mxu0 %v607
  %826 = vmatprep.subr.bf16.mxu0 0
  %827 = vmatpush1.bf16.msra.mxu0 %v608
  %828 = vmatprep.subr.bf16.mxu0 0
  %829 = vmatpush1.bf16.msra.mxu0 %v609
  %830 = vmatprep.subr.bf16.mxu0 0
  %831 = vmatpush1.bf16.msra.mxu0 %v610
  %832 = vmatprep.subr.bf16.mxu0 0
  %833 = vmatpush1.bf16.msra.mxu0 %v611
  %834 = vmatprep.subr.bf16.mxu0 0
  %835 = vmatpush1.bf16.msra.mxu0 %v612
  %836 = vmatprep.subr.bf16.mxu0 0
  %837 = vmatpush1.bf16.msra.mxu0 %v613
  %838 = vmatprep.subr.bf16.mxu0 0
  %839 = vmatpush1.bf16.msra.mxu0 %v614
  %840 = vmatprep.subr.bf16.mxu0 0
  %841 = vmatpush1.bf16.msra.mxu0 %v615
  %842 = vmatprep.mubr.bf16.mxu0 %v249
  %843 = vmatmul.mubr.bf16.gmra.mrb[0].mxu0 %v248
  %v844 = vpop.f32.mrb[0].mxu0
  %v845 = vadd.f32 %v796, %v844
  %v846 = vpop.f32.mrb[0].mxu0
  %v847 = vpop.f32.mrb[0].mxu0
  %v848 = vadd.f32 %v799, %v847
  %v849 = vpop.f32.mrb[0].mxu0
  %850 = vmatprep.mubr.bf16.mxu0 %v258
  %851 = vmatmul.mubr.bf16.gmra.mrb[0].mxu0 %v257
  %v852 = vpop.f32.mrb[0].mxu0
  %v853 = vadd.f32 %v804, %v852
  %v854 = vpop.f32.mrb[0].mxu0
  %v855 = vpop.f32.mrb[0].mxu0
  %v856 = vadd.f32 %v807, %v855
  %v857 = vpop.f32.mrb[0].mxu0
  %858 = vdwg.mxu0
  %859 = vmatprep.subr.bf16.mxu0 0
  %860 = vmatpush1.bf16.msra.mxu0 %v616
  %861 = vmatprep.subr.bf16.mxu0 0
  %862 = vmatpush1.bf16.msra.mxu0 %v617
  %863 = vmatprep.subr.bf16.mxu0 0
  %864 = vmatpush1.bf16.msra.mxu0 %v618
  %865 = vmatprep.subr.bf16.mxu0 0
  %866 = vmatpush1.bf16.msra.mxu0 %v619
  %867 = vmatprep.subr.bf16.mxu0 0
  %868 = vmatpush1.bf16.msra.mxu0 %v620
  %869 = vmatprep.subr.bf16.mxu0 0
  %870 = vmatpush1.bf16.msra.mxu0 %v621
  %871 = vmatprep.subr.bf16.mxu0 0
  %872 = vmatpush1.bf16.msra.mxu0 %v622
  %873 = vmatprep.subr.bf16.mxu0 0
  %874 = vmatpush1.bf16.msra.mxu0 %v623
  %875 = vmatprep.subr.bf16.mxu0 0
  %876 = vmatpush1.bf16.msra.mxu0 %v624
  %877 = vmatprep.subr.bf16.mxu0 0
  %878 = vmatpush1.bf16.msra.mxu0 %v625
  %879 = vmatprep.subr.bf16.mxu0 0
  %880 = vmatpush1.bf16.msra.mxu0 %v626
  %881 = vmatprep.subr.bf16.mxu0 0
  %882 = vmatpush1.bf16.msra.mxu0 %v627
  %883 = vmatprep.subr.bf16.mxu0 0
  %884 = vmatpush1.bf16.msra.mxu0 %v628
  %885 = vmatprep.subr.bf16.mxu0 0
  %886 = vmatpush1.bf16.msra.mxu0 %v629
  %887 = vmatprep.subr.bf16.mxu0 0
  %888 = vmatpush1.bf16.msra.mxu0 %v630
  %889 = vmatprep.subr.bf16.mxu0 0
  %890 = vmatpush1.bf16.msra.mxu0 %v631
  %891 = vmatprep.mubr.bf16.mxu0 %v251
  %892 = vmatmul.mubr.bf16.gmra.mrb[0].mxu0 %v250
  %v893 = vpop.f32.mrb[0].mxu0
  %v894 = vadd.f32 %v845, %v893
  %v895 = vpop.f32.mrb[0].mxu0
  %v896 = vpop.f32.mrb[0].mxu0
  %v897 = vadd.f32 %v848, %v896
  %v898 = vpop.f32.mrb[0].mxu0
  %899 = vmatprep.mubr.bf16.mxu0 %v260
  %900 = vmatmul.mubr.bf16.gmra.mrb[0].mxu0 %v259
  %v901 = vpop.f32.mrb[0].mxu0
  %v902 = vadd.f32 %v853, %v901
  %v903 = vpop.f32.mrb[0].mxu0
  %v904 = vpop.f32.mrb[0].mxu0
  %v905 = vadd.f32 %v856, %v904
  %v906 = vpop.f32.mrb[0].mxu0
  %907 = vdwg.mxu0
  %908 = vmatprep.subr.bf16.mxu0 0
  %909 = vmatpush1.bf16.msra.mxu0 %v632
  %910 = vmatprep.subr.bf16.mxu0 0
  %911 = vmatpush1.bf16.msra.mxu0 %v633
  %912 = vmatprep.subr.bf16.mxu0 0
  %913 = vmatpush1.bf16.msra.mxu0 %v634
  %914 = vmatprep.subr.bf16.mxu0 0
  %915 = vmatpush1.bf16.msra.mxu0 %v635
  %916 = vmatprep.subr.bf16.mxu0 0
  %917 = vmatpush1.bf16.msra.mxu0 %v636
  %918 = vmatprep.subr.bf16.mxu0 0
  %919 = vmatpush1.bf16.msra.mxu0 %v637
  %920 = vmatprep.subr.bf16.mxu0 0
  %921 = vmatpush1.bf16.msra.mxu0 %v638
  %922 = vmatprep.subr.bf16.mxu0 0
  %923 = vmatpush1.bf16.msra.mxu0 %v639
  %924 = vmatprep.subr.bf16.mxu0 0
  %925 = vmatpush1.bf16.msra.mxu0 0
  %926 = vmatprep.subr.bf16.mxu0 0
  %927 = vmatpush1.bf16.msra.mxu0 0
  %928 = vmatprep.subr.bf16.mxu0 0
  %929 = vmatpush1.bf16.msra.mxu0 0
  %930 = vmatprep.subr.bf16.mxu0 0
  %931 = vmatpush1.bf16.msra.mxu0 0
  %932 = vmatprep.subr.bf16.mxu0 0
  %933 = vmatpush1.bf16.msra.mxu0 0
  %934 = vmatprep.subr.bf16.mxu0 0
  %935 = vmatpush1.bf16.msra.mxu0 0
  %936 = vmatprep.subr.bf16.mxu0 0
  %937 = vmatpush1.bf16.msra.mxu0 0
  %938 = vmatprep.subr.bf16.mxu0 0
  %939 = vmatpush1.bf16.msra.mxu0 0
  %940 = vmatprep.mubr.bf16.mxu0 0
  %941 = vmatmul.mubr.bf16.gmra.mrb[0].mxu0 %v252
  %v942 = vpop.f32.mrb[0].mxu0
  %v943 = vadd.f32 %v894, %v942
  %v944 = vpop.f32.mrb[0].mxu0
  %v945 = vpop.f32.mrb[0].mxu0
  %v946 = vadd.f32 %v897, %v945
  %v947 = vpop.f32.mrb[0].mxu0
  %948 = vmatprep.mubr.bf16.mxu0 0
  %949 = vmatmul.mubr.bf16.gmra.mrb[0].mxu0 %v261
  %v950 = vpop.f32.mrb[0].mxu0
  %v951 = vadd.f32 %v902, %v950
  %v952 = vpop.f32.mrb[0].mxu0
  %v953 = vpop.f32.mrb[0].mxu0
  %v954 = vadd.f32 %v905, %v953
  %v955 = vpop.f32.mrb[0].mxu0
  %956 = vdwg.mxu0
  %s957 = smul.u32 0, 32
  %s958 = scalar_lea.vmem [#allocation2], %s957
  %959 = vst [vmem:[%s958] sm:$0xff] %v943
  %960 = vst [vmem:[%s958 + $0x8] sm:$0xff] %v946
  %961 = vst [vmem:[%s958 + $0x10] sm:$0xff] %v951
  %962 = vst [vmem:[%s958 + $0x18] sm:$0xff] %v954
  %v963 = vld [vmem:[#allocation3] sm:$0x1]
  %v964 = vadd.f32 %v943, %v946
  %v965 = vadd.f32 %v964, %v951
  %v966 = vadd.f32 %v965, %v954
  %v967 = vrot.slane %v966, 4
  %v968 = vadd.f32 %v966, %v967
  %v969 = vrot.slane %v968, 2
  %v970 = vadd.f32 %v968, %v969
  %v971 = vrot.slane %v970, 1
  %v972 = vadd.f32 %v970, %v971
  %v973 = vadd.f32 %v963, %v972
  %974 = vst [vmem:[#allocation3] sm:$0x1] %v973
  %v975 = vld [vmem:[#allocation4] sm:$0x1]
  %v976 = vmul.f32 %v943, %v943
  %v977 = vmul.f32 %v946, %v946
  %v978 = vmul.f32 %v951, %v951
  %v979 = vmul.f32 %v954, %v954
  %v980 = vadd.f32 %v976, %v977
  %v981 = vadd.f32 %v980, %v978
  %v982 = vadd.f32 %v981, %v979
  %v983 = vrot.slane %v982, 4
  %v984 = vadd.f32 %v982, %v983
  %v985 = vrot.slane %v984, 2
  %v986 = vadd.f32 %v984, %v985
  %v987 = vrot.slane %v986, 1
  %v988 = vadd.f32 %v986, %v987
  %v989 = vadd.f32 %v975, %v988
  %990 = vst [vmem:[#allocation4] sm:$0x1] %v989
  // Predicated region
  $region22: #{reference_encoder_forward.4} parent=0 // pred_check
    %p991 = pneg %p18
  $region23: #{reference_encoder_forward.4} parent=0 // pred_check_branch
    %993 = sbr.rel (%p991) target = $region25
  $region24: #{reference_encoder_forward.4} parent=0 // pred_region
    %v994 = vld [vmem:[#allocation3] sm:$0x1]
    %v995 = vmul.f32 %v994, 0.055555556
    %v996 = vld [vmem:[#allocation4] sm:$0x1]
    %v997 = vmul.f32 %v996, 0.055555556
    %v998 = vmul.f32 %v995, %v995
    %v999 = vsub.f32 %v997, %v998
    %v1000 = vmax.f32 %v999, 0.0
    %v1001 = vld [vmem:[%s2] sm:$0x1]
    %v1002 = vadd.f32 %v1000, 1e-05
    %v1003 = vrsqrt.pop %v1002
    %v1004 = vmul.f32 %v1001, %v1003
    %v1005 = vld [vmem:[%s3] sm:$0x1]
    %v1006 = vmul.f32 %v995, %v1004
    %v1007 = vsub.f32 %v1005, %v1006
    %v1008 = vld [vmem:[#allocation2] sm:$0xff]
    %v1009 = vld [vmem:[#allocation2 + $0x8] sm:$0xff]
    %v1010 = vld [vmem:[#allocation2 + $0x10] sm:$0xff]
    %v1011 = vld [vmem:[#allocation2 + $0x18] sm:$0xff]
    %v1013 = vlaneseq
    %v1014 = vshrl.u32 %v1013, 7
    %v1015 = vsub.s32 0, %v1014
    %v1016 = vrot.slane %v1004, %v1015
    %v1018 = vmul.f32 %v1008, %v1016
    %v1019 = vmul.f32 %v1009, %v1016
    %v1020 = vmul.f32 %v1010, %v1016
    %v1021 = vmul.f32 %v1011, %v1016
    %v1023 = vlaneseq
    %v1024 = vshrl.u32 %v1023, 7
    %v1025 = vsub.s32 0, %v1024
    %v1026 = vrot.slane %v1007, %v1025
    %v1028 = vadd.f32 %v1018, %v1026
    %v1029 = vadd.f32 %v1019, %v1026
    %v1030 = vadd.f32 %v1020, %v1026
    %v1031 = vadd.f32 %v1021, %v1026
    %v1032 = vmax.f32 %v1028, 0.0
    %v1033 = vmax.f32 %v1029, 0.0
    %v1034 = vmax.f32 %v1030, 0.0
    %v1035 = vmax.f32 %v1031, 0.0
    %v1036 = vpack.c.bf16 %v1033, %v1032
    %v1037 = vpack.c.bf16 %v1035, %v1034
    %v1040 = vunpack.c.l.b16 %v1036
    %v1041 = vunpack.c.h.b16 %v1036
    %v1042 = vunpack.c.l.b16 %v1037
    %v1043 = vunpack.c.h.b16 %v1037
    %v1044 = vpack.c.b16 %v1040, %v1040
    %v1045 = vpack.c.b16 %v1041, %v1041
    %v1046 = vpack.c.b16 %v1042, %v1042
    %v1047 = vpack.c.b16 %v1043, %v1043
    %1052 = vst [vmem:[%s4] sm:$0xf] %v1044
    %1053 = vst [vmem:[%s4 + $0x4] sm:$0xf] %v1045
    %1054 = vst [vmem:[%s4 + $0x8] sm:$0xf] %v1046
    %1055 = vst [vmem:[%s4 + $0xc] sm:$0xf] %v1047
  $region25: #{reference_encoder_forward.4} parent=0 // pred_fallthru
    _
  // Predicated region
  $region26: #{reference_encoder_forward.4} parent=0 // pred_check
    _
  $region27: #{reference_encoder_forward.4} parent=0 // pred_check_branch
    %1057 = sbr.rel (0) target = $region29
  $region28: #{reference_encoder_forward.4} parent=0 // pred_region
    _
  $region29: #{reference_encoder_forward.4} parent=0 // pred_fallthru
    _
  // Predicated region
  $region30: #{reference_encoder_forward.4} parent=0 // pred_check
    _
  $region31: #{reference_encoder_forward.4} parent=0 // pred_check_branch
    %1059 = sbr.rel (0) target = $region33
  $region32: #{reference_encoder_forward.4} parent=0 // pred_region
    _
  $region33: #{reference_encoder_forward.4} parent=0 // pred_fallthru
    _

// kernel: reference_encoder_forward.5
$region0: #{reference_encoder_forward.5}
  #allocation0 [shape = 'u32[]', space=smem, size = 0x4, offset = 0x4, fixed_abs, tag = 'smem constant byte address 0x4 - core index']
  #allocation1 [shape = 'u32[144,128]{1,0:T(1,128)}', space=vmem, size = 0x12000, scoped, tag = 'internal scratch']
  %s0 = inlined_call_operand.vmem [shape: bf16[2,128], index: 0, kind: input, shape index: {}]
  %s1 = inlined_call_operand.vmem [shape: bf16[128,384], index: 1, kind: input, shape index: {}]
  %s2 = inlined_call_operand.vmem [shape: bf16[128,384], index: 2, kind: input, shape index: {}]
  %s3 = inlined_call_operand.vmem [shape: f32[1,384], index: 3, kind: input, shape index: {}]
  %s4 = inlined_call_operand.vmem [shape: f32[1,384], index: 4, kind: input, shape index: {}]
  %s5 = inlined_call_operand.vmem [shape: bf16[128,128], index: 5, kind: input, shape index: {}]
  %s6 = inlined_call_operand.vmem [shape: f32[1,128], index: 6, kind: input, shape index: {}]
  %s7 = inlined_call_operand.hbm [shape: f32[2,128], index: 7, kind: output, shape index: {}]
  %s8 = sld [smem:[#allocation0]]
  $region38: #{reference_encoder_forward.5} parent=0
    _
  %s10 = ssub.s32 1, %s8
  %s11 = scalar_select 0, %s10, %s8
  $region1: #{reference_encoder_forward.5} parent=0
    #allocation2 [shape = 'u8[1024]{0}', space=vmem, size = 0x400, scoped, tag = 'output window, operand 0, single buffered']
    #allocation3 [shape = 's32[1]{0}', space=sflag, size = 0x4, scoped, tag = 'scoped memory for reference_encoder_forward.5']
    %12 = vsyncpa [#allocation3], 0
    // Predicated region
    $region2: #{reference_encoder_forward.5} parent=1 // pred_check
      _
    $region3: #{reference_encoder_forward.5} parent=1 // pred_check_branch
      %14 = sbr.rel (0) target = $region5
    $region4: #{reference_encoder_forward.5} parent=1 // pred_region
      _
    $region5: #{reference_encoder_forward.5} parent=1 // pred_fallthru
      _
    // Predicated region
    $region6: #{reference_encoder_forward.5} parent=1 // pred_check
      _
    $region7: #{reference_encoder_forward.5} parent=1 // pred_check_branch
      %16 = sbr.rel (0) target = $region9
    $region8: #{reference_encoder_forward.5} parent=1 // pred_region
      _
    $region9: #{reference_encoder_forward.5} parent=1 // pred_fallthru
      _
    // Predicated region
    $region10: #{reference_encoder_forward.5} parent=1 // pred_check
      _
    $region11: #{reference_encoder_forward.5} parent=1 // pred_check_branch
      %18 = sbr.rel (0) target = $region13
    $region12: #{reference_encoder_forward.5} parent=1 // pred_region
      _
    $region13: #{reference_encoder_forward.5} parent=1 // pred_fallthru
      _
    // Predicated region
    $region14: #{reference_encoder_forward.5} parent=1 // pred_check
      _
    $region15: #{reference_encoder_forward.5} parent=1 // pred_check_branch
      %20 = sbr.rel (0) target = $region17
    $region16: #{reference_encoder_forward.5} parent=1 // pred_region
      _
    $region17: #{reference_encoder_forward.5} parent=1 // pred_fallthru
      _
    // Predicated region
    $region18: #{reference_encoder_forward.5} parent=1 // pred_check
      _
    $region19: #{reference_encoder_forward.5} parent=1 // pred_check_branch
      %22 = sbr.rel (0) target = $region21
    $region20: #{reference_encoder_forward.5} parent=1 // pred_region
      _
    $region21: #{reference_encoder_forward.5} parent=1 // pred_fallthru
      _
    // Predicated region
    $region22: #{reference_encoder_forward.5} parent=1 // pred_check
      _
    $region23: #{reference_encoder_forward.5} parent=1 // pred_check_branch
      %24 = sbr.rel (0) target = $region25
    $region24: #{reference_encoder_forward.5} parent=1 // pred_region
      _
    $region25: #{reference_encoder_forward.5} parent=1 // pred_fallthru
      _
    // Predicated region
    $region26: #{reference_encoder_forward.5} parent=1 // pred_check
      _
    $region27: #{reference_encoder_forward.5} parent=1 // pred_check_branch
      %26 = sbr.rel (0) target = $region29
    $region28: #{reference_encoder_forward.5} parent=1 // pred_region
      _
    $region29: #{reference_encoder_forward.5} parent=1 // pred_fallthru
      _
    %v28 = vld [vmem:[%s0] sm:$0x1]
    %v29 = vld [vmem:[%s1] sm:$0xff]
    %v30 = vld [vmem:[%s1 + $0x8] sm:$0xf]
    %v31 = vld [vmem:[%s1 + $0xc] sm:$0xff]
    %v32 = vld [vmem:[%s1 + $0x14] sm:$0xf]
    %v33 = vld [vmem:[%s1 + $0x18] sm:$0xff]
    %v34 = vld [vmem:[%s1 + $0x20] sm:$0xf]
    %v35 = vld [vmem:[%s1 + $0x24] sm:$0xff]
    %v36 = vld [vmem:[%s1 + $0x2c] sm:$0xf]
    %v37 = vld [vmem:[%s1 + $0x30] sm:$0xff]
    %v38 = vld [vmem:[%s1 + $0x38] sm:$0xf]
    %v39 = vld [vmem:[%s1 + $0x3c] sm:$0xff]
    %v40 = vld [vmem:[%s1 + $0x44] sm:$0xf]
    %v41 = vld [vmem:[%s1 + $0x48] sm:$0xff]
    %v42 = vld [vmem:[%s1 + $0x50] sm:$0xf]
    %v43 = vld [vmem:[%s1 + $0x54] sm:$0xff]
    %v44 = vld [vmem:[%s1 + $0x5c] sm:$0xf]
    %v45 = vld [vmem:[%s1 + $0x60] sm:$0xff]
    %v46 = vld [vmem:[%s1 + $0x68] sm:$0xf]
    %v47 = vld [vmem:[%s1 + $0x6c] sm:$0xff]
    %v48 = vld [vmem:[%s1 + $0x74] sm:$0xf]
    %v49 = vld [vmem:[%s1 + $0x78] sm:$0xff]
    %v50 = vld [vmem:[%s1 + $0x80] sm:$0xf]
    %v51 = vld [vmem:[%s1 + $0x84] sm:$0xff]
    %v52 = vld [vmem:[%s1 + $0x8c] sm:$0xf]
    %v53 = vld [vmem:[%s1 + $0x90] sm:$0xff]
    %v54 = vld [vmem:[%s1 + $0x98] sm:$0xf]
    %v55 = vld [vmem:[%s1 + $0x9c] sm:$0xff]
    %v56 = vld [vmem:[%s1 + $0xa4] sm:$0xf]
    %v57 = vld [vmem:[%s1 + $0xa8] sm:$0xff]
    %v58 = vld [vmem:[%s1 + $0xb0] sm:$0xf]
    %v59 = vld [vmem:[%s1 + $0xb4] sm:$0xff]
    %v60 = vld [vmem:[%s1 + $0xbc] sm:$0xf]
    %v61 = vld [vmem:[%s3] sm:$0x7]
    %v63 = vlaneseq
    %v64 = vshrl.u32 %v63, 7
    %v65 = vsub.s32 0, %v64
    %v66 = vrot.slane %v61, %v65
    %v67 = vlaneseq
    %v68 = vshrl.u32 %v67, 7
    %v69 = vsub.s32 1, %v68
    %v70 = vrot.slane %v61, %v69
    %v71 = vlaneseq
    %v72 = vshrl.u32 %v71, 7
    %v73 = vsub.s32 2, %v72
    %v74 = vrot.slane %v61, %v73
    %v110 = vunpack.c.l.b16 %v29
    %v111 = vunpack.c.h.b16 %v29
    %v112 = vunpack.c.l.b16 %v30
    %v113 = vunpack.c.l.b16 %v31
    %v114 = vunpack.c.h.b16 %v31
    %v115 = vunpack.c.l.b16 %v32
    %v116 = vunpack.c.l.b16 %v33
    %v117 = vunpack.c.h.b16 %v33
    %v118 = vunpack.c.l.b16 %v34
    %v119 = vunpack.c.l.b16 %v35
    %v120 = vunpack.c.h.b16 %v35
    %v121 = vunpack.c.l.b16 %v36
    %v122 = vunpack.c.l.b16 %v37
    %v123 = vunpack.c.h.b16 %v37
    %v124 = vunpack.c.l.b16 %v38
    %v125 = vunpack.c.l.b16 %v39
    %v126 = vunpack.c.h.b16 %v39
    %v127 = vunpack.c.l.b16 %v40
    %v128 = vunpack.c.l.b16 %v41
    %v129 = vunpack.c.h.b16 %v41
    %v130 = vunpack.c.l.b16 %v42
    %v131 = vunpack.c.l.b16 %v43
    %v132 = vunpack.c.h.b16 %v43
    %v133 = vunpack.c.l.b16 %v44
    %v134 = vunpack.c.l.b16 %v45
    %v135 = vunpack.c.h.b16 %v45
    %v136 = vunpack.c.l.b16 %v46
    %v137 = vunpack.c.l.b16 %v47
    %v138 = vunpack.c.h.b16 %v47
    %v139 = vunpack.c.l.b16 %v48
    %v140 = vunpack.c.l.b16 %v49
    %v141 = vunpack.c.h.b16 %v49
    %v142 = vunpack.c.l.b16 %v50
    %v143 = vunpack.c.l.b16 %v51
    %v144 = vunpack.c.h.b16 %v51
    %v145 = vunpack.c.l.b16 %v52
    %v146 = vunpack.c.l.b16 %v53
    %v147 = vunpack.c.h.b16 %v53
    %v148 = vunpack.c.l.b16 %v54
    %v149 = vunpack.c.l.b16 %v55
    %v150 = vunpack.c.h.b16 %v55
    %v151 = vunpack.c.l.b16 %v56
    %v152 = vunpack.c.l.b16 %v57
    %v153 = vunpack.c.h.b16 %v57
    %v154 = vunpack.c.l.b16 %v58
    %v155 = vunpack.c.l.b16 %v59
    %v156 = vunpack.c.h.b16 %v59
    %v157 = vunpack.c.l.b16 %v60
    %v158 = vpack.c.b16 %v113, %v110
    %v159 = vpack.c.b16 %v114, %v111
    %v160 = vpack.c.b16 %v115, %v112
    %v161 = vpack.c.b16 %v119, %v116
    %v162 = vpack.c.b16 %v120, %v117
    %v163 = vpack.c.b16 %v121, %v118
    %v164 = vpack.c.b16 %v125, %v122
    %v165 = vpack.c.b16 %v126, %v123
    %v166 = vpack.c.b16 %v127, %v124
    %v167 = vpack.c.b16 %v131, %v128
    %v168 = vpack.c.b16 %v132, %v129
    %v169 = vpack.c.b16 %v133, %v130
    %v170 = vpack.c.b16 %v137, %v134
    %v171 = vpack.c.b16 %v138, %v135
    %v172 = vpack.c.b16 %v139, %v136
    %v173 = vpack.c.b16 %v143, %v140
    %v174 = vpack.c.b16 %v144, %v141
    %v175 = vpack.c.b16 %v145, %v142
    %v176 = vpack.c.b16 %v149, %v146
    %v177 = vpack.c.b16 %v150, %v147
    %v178 = vpack.c.b16 %v151, %v148
    %v179 = vpack.c.b16 %v155, %v152
    %v180 = vpack.c.b16 %v156, %v153
    %v181 = vpack.c.b16 %v157, %v154
    %206 = vmatprep.subr.bf16.mxu0 %v159
    %207 = vmatpush1.bf16.msra.mxu0 %v158
    %208 = vmatprep.subr.bf16.mxu0 %v162
    %209 = vmatpush1.bf16.msra.mxu0 %v161
    %210 = vmatprep.subr.bf16.mxu0 %v165
    %211 = vmatpush1.bf16.msra.mxu0 %v164
    %212 = vmatprep.subr.bf16.mxu0 %v168
    %213 = vmatpush1.bf16.msra.mxu0 %v167
    %214 = vmatprep.subr.bf16.mxu0 %v171
    %215 = vmatpush1.bf16.msra.mxu0 %v170
    %216 = vmatprep.subr.bf16.mxu0 %v174
    %217 = vmatpush1.bf16.msra.mxu0 %v173
    %218 = vmatprep.subr.bf16.mxu0 %v177
    %219 = vmatpush1.bf16.msra.mxu0 %v176
    %220 = vmatprep.subr.bf16.mxu0 %v180
    %221 = vmatpush1.bf16.msra.mxu0 %v179
    %222 = vmatprep.subr.bf16.mxu0 0
    %223 = vmatpush1.bf16.msra.mxu0 0
    %224 = vmatprep.subr.bf16.mxu0 0
    %225 = vmatpush1.bf16.msra.mxu0 0
    %226 = vmatprep.subr.bf16.mxu0 0
    %227 = vmatpush1.bf16.msra.mxu0 0
    %228 = vmatprep.subr.bf16.mxu0 0
    %229 = vmatpush1.bf16.msra.mxu0 0
    %230 = vmatprep.subr.bf16.mxu0 0
    %231 = vmatpush1.bf16.msra.mxu0 0
    %232 = vmatprep.subr.bf16.mxu0 0
    %233 = vmatpush1.bf16.msra.mxu0 0
    %234 = vmatprep.subr.bf16.mxu0 0
    %235 = vmatpush1.bf16.msra.mxu0 0
    %236 = vmatprep.subr.bf16.mxu0 0
    %237 = vmatpush1.bf16.msra.mxu0 0
    %238 = vmatprep.mubr.bf16.mxu0 0
    %239 = vmatmul.mubr.bf16.gmra.mrb[0].mxu0 %v28
    %v240 = vpop.f32.mrb[0].mxu0
    %v241 = vadd.f32 %v66, %v240
    %v242 = vpop.f32.mrb[0].mxu0
    %v243 = vadd.f32 %v70, %v242
    %v244 = vpop.f32.mrb[0].mxu0
    %v245 = vpop.f32.mrb[0].mxu0
    %246 = vdwg.mxu0
    %247 = vmatprep.subr.bf16.mxu0 0
    %248 = vmatpush1.bf16.msra.mxu0 %v160
    %249 = vmatprep.subr.bf16.mxu0 0
    %250 = vmatpush1.bf16.msra.mxu0 %v163
    %251 = vmatprep.subr.bf16.mxu0 0
    %252 = vmatpush1.bf16.msra.mxu0 %v166
    %253 = vmatprep.subr.bf16.mxu0 0
    %254 = vmatpush1.bf16.msra.mxu0 %v169
    %255 = vmatprep.subr.bf16.mxu0 0
    %256 = vmatpush1.bf16.msra.mxu0 %v172
    %257 = vmatprep.subr.bf16.mxu0 0
    %258 = vmatpush1.bf16.msra.mxu0 %v175
    %259 = vmatprep.subr.bf16.mxu0 0
    %260 = vmatpush1.bf16.msra.mxu0 %v178
    %261 = vmatprep.subr.bf16.mxu0 0
    %262 = vmatpush1.bf16.msra.mxu0 %v181
    %263 = vmatprep.subr.bf16.mxu0 0
    %264 = vmatpush1.bf16.msra.mxu0 0
    %265 = vmatprep.subr.bf16.mxu0 0
    %266 = vmatpush1.bf16.msra.mxu0 0
    %267 = vmatprep.subr.bf16.mxu0 0
    %268 = vmatpush1.bf16.msra.mxu0 0
    %269 = vmatprep.subr.bf16.mxu0 0
    %270 = vmatpush1.bf16.msra.mxu0 0
    %271 = vmatprep.subr.bf16.mxu0 0
    %272 = vmatpush1.bf16.msra.mxu0 0
    %273 = vmatprep.subr.bf16.mxu0 0
    %274 = vmatpush1.bf16.msra.mxu0 0
    %275 = vmatprep.subr.bf16.mxu0 0
    %276 = vmatpush1.bf16.msra.mxu0 0
    %277 = vmatprep.subr.bf16.mxu0 0
    %278 = vmatpush1.bf16.msra.mxu0 0
    %279 = vmatprep.mubr.bf16.mxu0 0
    %280 = vmatmul.mubr.bf16.gmra.mrb[0].mxu0 %v28
    %v281 = vpop.f32.mrb[0].mxu0
    %v282 = vadd.f32 %v74, %v281
    %v283 = vpop.f32.mrb[0].mxu0
    %v284 = vpop.f32.mrb[0].mxu0
    %v285 = vpop.f32.mrb[0].mxu0
    %286 = vdwg.mxu0
    %v287 = vld [vmem:[%s2] sm:$0xff]
    %v288 = vld [vmem:[%s2 + $0x8] sm:$0xf]
    %v289 = vld [vmem:[%s2 + $0xc] sm:$0xff]
    %v290 = vld [vmem:[%s2 + $0x14] sm:$0xf]
    %v291 = vld [vmem:[%s2 + $0x18] sm:$0xff]
    %v292 = vld [vmem:[%s2 + $0x20] sm:$0xf]
    %v293 = vld [vmem:[%s2 + $0x24] sm:$0xff]
    %v294 = vld [vmem:[%s2 + $0x2c] sm:$0xf]
    %v295 = vld [vmem:[%s2 + $0x30] sm:$0xff]
    %v296 = vld [vmem:[%s2 + $0x38] sm:$0xf]
    %v297 = vld [vmem:[%s2 + $0x3c] sm:$0xff]
    %v298 = vld [vmem:[%s2 + $0x44] sm:$0xf]
    %v299 = vld [vmem:[%s2 + $0x48] sm:$0xff]
    %v300 = vld [vmem:[%s2 + $0x50] sm:$0xf]
    %v301 = vld [vmem:[%s2 + $0x54] sm:$0xff]
    %v302 = vld [vmem:[%s2 + $0x5c] sm:$0xf]
    %v303 = vld [vmem:[%s2 + $0x60] sm:$0xff]
    %v304 = vld [vmem:[%s2 + $0x68] sm:$0xf]
    %v305 = vld [vmem:[%s2 + $0x6c] sm:$0xff]
    %v306 = vld [vmem:[%s2 + $0x74] sm:$0xf]
    %v307 = vld [vmem:[%s2 + $0x78] sm:$0xff]
    %v308 = vld [vmem:[%s2 + $0x80] sm:$0xf]
    %v309 = vld [vmem:[%s2 + $0x84] sm:$0xff]
    %v310 = vld [vmem:[%s2 + $0x8c] sm:$0xf]
    %v311 = vld [vmem:[%s2 + $0x90] sm:$0xff]
    %v312 = vld [vmem:[%s2 + $0x98] sm:$0xf]
    %v313 = vld [vmem:[%s2 + $0x9c] sm:$0xff]
    %v314 = vld [vmem:[%s2 + $0xa4] sm:$0xf]
    %v315 = vld [vmem:[%s2 + $0xa8] sm:$0xff]
    %v316 = vld [vmem:[%s2 + $0xb0] sm:$0xf]
    %v317 = vld [vmem:[%s2 + $0xb4] sm:$0xff]
    %v318 = vld [vmem:[%s2 + $0xbc] sm:$0xf]
    %v319 = vld [vmem:[%s4] sm:$0x7]
    %v352 = vunpack.c.l.b16 %v287
    %v353 = vunpack.c.h.b16 %v287
    %v354 = vunpack.c.l.b16 %v288
    %v355 = vunpack.c.l.b16 %v289
    %v356 = vunpack.c.h.b16 %v289
    %v357 = vunpack.c.l.b16 %v290
    %v358 = vunpack.c.l.b16 %v291
    %v359 = vunpack.c.h.b16 %v291
    %v360 = vunpack.c.l.b16 %v292
    %v361 = vunpack.c.l.b16 %v293
    %v362 = vunpack.c.h.b16 %v293
    %v363 = vunpack.c.l.b16 %v294
    %v364 = vunpack.c.l.b16 %v295
    %v365 = vunpack.c.h.b16 %v295
    %v366 = vunpack.c.l.b16 %v296
    %v367 = vunpack.c.l.b16 %v297
    %v368 = vunpack.c.h.b16 %v297
    %v369 = vunpack.c.l.b16 %v298
    %v370 = vunpack.c.l.b16 %v299
    %v371 = vunpack.c.h.b16 %v299
    %v372 = vunpack.c.l.b16 %v300
    %v373 = vunpack.c.l.b16 %v301
    %v374 = vunpack.c.h.b16 %v301
    %v375 = vunpack.c.l.b16 %v302
    %v376 = vunpack.c.l.b16 %v303
    %v377 = vunpack.c.h.b16 %v303
    %v378 = vunpack.c.l.b16 %v304
    %v379 = vunpack.c.l.b16 %v305
    %v380 = vunpack.c.h.b16 %v305
    %v381 = vunpack.c.l.b16 %v306
    %v382 = vunpack.c.l.b16 %v307
    %v383 = vunpack.c.h.b16 %v307
    %v384 = vunpack.c.l.b16 %v308
    %v385 = vunpack.c.l.b16 %v309
    %v386 = vunpack.c.h.b16 %v309
    %v387 = vunpack.c.l.b16 %v310
    %v388 = vunpack.c.l.b16 %v311
    %v389 = vunpack.c.h.b16 %v311
    %v390 = vunpack.c.l.b16 %v312
    %v391 = vunpack.c.l.b16 %v313
    %v392 = vunpack.c.h.b16 %v313
    %v393 = vunpack.c.l.b16 %v314
    %v394 = vunpack.c.l.b16 %v315
    %v395 = vunpack.c.h.b16 %v315
    %v396 = vunpack.c.l.b16 %v316
    %v397 = vunpack.c.l.b16 %v317
    %v398 = vunpack.c.h.b16 %v317
    %v399 = vunpack.c.l.b16 %v318
    %v400 = vpack.c.b16 %v355, %v352
    %v401 = vpack.c.b16 %v356, %v353
    %v402 = vpack.c.b16 %v357, %v354
    %v403 = vpack.c.b16 %v361, %v358
    %v404 = vpack.c.b16 %v362, %v359
    %v405 = vpack.c.b16 %v363, %v360
    %v406 = vpack.c.b16 %v367, %v364
    %v407 = vpack.c.b16 %v368, %v365
    %v408 = vpack.c.b16 %v369, %v366
    %v409 = vpack.c.b16 %v373, %v370
    %v410 = vpack.c.b16 %v374, %v371
    %v411 = vpack.c.b16 %v375, %v372
    %v412 = vpack.c.b16 %v379, %v376
    %v413 = vpack.c.b16 %v380, %v377
    %v414 = vpack.c.b16 %v381, %v378
    %v415 = vpack.c.b16 %v385, %v382
    %v416 = vpack.c.b16 %v386, %v383
    %v417 = vpack.c.b16 %v387, %v384
    %v418 = vpack.c.b16 %v391, %v388
    %v419 = vpack.c.b16 %v392, %v389
    %v420 = vpack.c.b16 %v393, %v390
    %v421 = vpack.c.b16 %v397, %v394
    %v422 = vpack.c.b16 %v398, %v395
    %v423 = vpack.c.b16 %v399, %v396
    %v449 = vlaneseq
    %v450 = vshrl.u32 %v449, 7
    %v451 = vsub.s32 0, %v450
    %v452 = vrot.slane %v319, %v451
    %v453 = vlaneseq
    %v454 = vshrl.u32 %v453, 7
    %v455 = vsub.s32 1, %v454
    %v456 = vrot.slane %v319, %v455
    %v457 = vlaneseq
    %v458 = vshrl.u32 %v457, 7
    %v459 = vsub.s32 2, %v458
    %v460 = vrot.slane %v319, %v459
    %464 = vmatprep.subr.bf16.mxu0 %v401
    %465 = vmatpush1.bf16.msra.mxu0 %v400
    %466 = vmatprep.subr.bf16.mxu0 %v404
    %467 = vmatpush1.bf16.msra.mxu0 %v403
    %468 = vmatprep.subr.bf16.mxu0 %v407
    %469 = vmatpush1.bf16.msra.mxu0 %v406
    %470 = vmatprep.subr.bf16.mxu0 %v410
    %471 = vmatpush1.bf16.msra.mxu0 %v409
    %472 = vmatprep.subr.bf16.mxu0 %v413
    %473 = vmatpush1.bf16.msra.mxu0 %v412
    %474 = vmatprep.subr.bf16.mxu0 %v416
    %475 = vmatpush1.bf16.msra.mxu0 %v415
    %476 = vmatprep.subr.bf16.mxu0 %v419
    %477 = vmatpush1.bf16.msra.mxu0 %v418
    %478 = vmatprep.subr.bf16.mxu0 %v422
    %479 = vmatpush1.bf16.msra.mxu0 %v421
    %480 = vmatprep.subr.bf16.mxu0 0
    %481 = vmatpush1.bf16.msra.mxu0 0
    %482 = vmatprep.subr.bf16.mxu0 0
    %483 = vmatpush1.bf16.msra.mxu0 0
    %484 = vmatprep.subr.bf16.mxu0 0
    %485 = vmatpush1.bf16.msra.mxu0 0
    %486 = vmatprep.subr.bf16.mxu0 0
    %487 = vmatpush1.bf16.msra.mxu0 0
    %488 = vmatprep.subr.bf16.mxu0 0
    %489 = vmatpush1.bf16.msra.mxu0 0
    %490 = vmatprep.subr.bf16.mxu0 0
    %491 = vmatpush1.bf16.msra.mxu0 0
    %492 = vmatprep.subr.bf16.mxu0 0
    %493 = vmatpush1.bf16.msra.mxu0 0
    %494 = vmatprep.subr.bf16.mxu0 0
    %495 = vmatpush1.bf16.msra.mxu0 0
    %496 = vmatprep.mubr.bf16.mxu0 0
    %497 = vmatmul.mubr.bf16.gmra.mrb[0].mxu0 0
    %v498 = vpop.f32.mrb[0].mxu0
    %v499 = vadd.f32 %v452, %v498
    %v500 = vpop.f32.mrb[0].mxu0
    %v501 = vadd.f32 %v456, %v500
    %v502 = vpop.f32.mrb[0].mxu0
    %v503 = vpop.f32.mrb[0].mxu0
    %504 = vdwg.mxu0
    %505 = vmatprep.subr.bf16.mxu0 0
    %506 = vmatpush1.bf16.msra.mxu0 %v402
    %507 = vmatprep.subr.bf16.mxu0 0
    %508 = vmatpush1.bf16.msra.mxu0 %v405
    %509 = vmatprep.subr.bf16.mxu0 0
    %510 = vmatpush1.bf16.msra.mxu0 %v408
    %511 = vmatprep.subr.bf16.mxu0 0
    %512 = vmatpush1.bf16.msra.mxu0 %v411
    %513 = vmatprep.subr.bf16.mxu0 0
    %514 = vmatpush1.bf16.msra.mxu0 %v414
    %515 = vmatprep.subr.bf16.mxu0 0
    %516 = vmatpush1.bf16.msra.mxu0 %v417
    %517 = vmatprep.subr.bf16.mxu0 0
    %518 = vmatpush1.bf16.msra.mxu0 %v420
    %519 = vmatprep.subr.bf16.mxu0 0
    %520 = vmatpush1.bf16.msra.mxu0 %v423
    %521 = vmatprep.subr.bf16.mxu0 0
    %522 = vmatpush1.bf16.msra.mxu0 0
    %523 = vmatprep.subr.bf16.mxu0 0
    %524 = vmatpush1.bf16.msra.mxu0 0
    %525 = vmatprep.subr.bf16.mxu0 0
    %526 = vmatpush1.bf16.msra.mxu0 0
    %527 = vmatprep.subr.bf16.mxu0 0
    %528 = vmatpush1.bf16.msra.mxu0 0
    %529 = vmatprep.subr.bf16.mxu0 0
    %530 = vmatpush1.bf16.msra.mxu0 0
    %531 = vmatprep.subr.bf16.mxu0 0
    %532 = vmatpush1.bf16.msra.mxu0 0
    %533 = vmatprep.subr.bf16.mxu0 0
    %534 = vmatpush1.bf16.msra.mxu0 0
    %535 = vmatprep.subr.bf16.mxu0 0
    %536 = vmatpush1.bf16.msra.mxu0 0
    %537 = vmatprep.mubr.bf16.mxu0 0
    %538 = vmatmul.mubr.bf16.gmra.mrb[0].mxu0 0
    %v539 = vpop.f32.mrb[0].mxu0
    %v540 = vadd.f32 %v460, %v539
    %v541 = vpop.f32.mrb[0].mxu0
    %v542 = vpop.f32.mrb[0].mxu0
    %v543 = vpop.f32.mrb[0].mxu0
    %544 = vdwg.mxu0
    %v545 = vadd.f32 %v241, %v499
    %v546 = vxor.u32 %v545, 2147483648
    %v547 = vmul.f32 %v546, 1.442695
    %v548 = vpow.pop %v547
    %v549 = vadd.f32 %v548, 1.0
    %v550 = vrcp.pop %v549
    %v551 = vmul.f32 1.0, %v550
    %v552 = vadd.f32 %v243, %v501
    %v553 = vxor.u32 %v552, 2147483648
    %v554 = vmul.f32 %v553, 1.442695
    %v555 = vpow.pop %v554
    %v556 = vadd.f32 %v555, 1.0
    %v557 = vrcp.pop %v556
    %v558 = vmul.f32 1.0, %v557
    %v559 = vmul.f32 %v551, %v540
    %v560 = vadd.f32 %v282, %v559
    %v561 = vtanh.pop %v560
    %v562 = vsub.f32 1.0, %v558
    %v563 = vmul.f32 %v562, %v561
    %v564 = vmul.f32 %v558, 0.0
    %v565 = vadd.f32 %v563, %v564
    %v566 = vpack.c.bf16 %v565, %v565
    %567 = vmatprep.subr.bf16.mxu0 %v401
    %568 = vmatpush1.bf16.msra.mxu0 %v400
    %569 = vmatprep.subr.bf16.mxu0 %v404
    %570 = vmatpush1.bf16.msra.mxu0 %v403
    %571 = vmatprep.subr.bf16.mxu0 %v407
    %572 = vmatpush1.bf16.msra.mxu0 %v406
    %573 = vmatprep.subr.bf16.mxu0 %v410
    %574 = vmatpush1.bf16.msra.mxu0 %v409
    %575 = vmatprep.subr.bf16.mxu0 %v413
    %576 = vmatpush1.bf16.msra.mxu0 %v412
    %577 = vmatprep.subr.bf16.mxu0 %v416
    %578 = vmatpush1.bf16.msra.mxu0 %v415
    %579 = vmatprep.subr.bf16.mxu0 %v419
    %580 = vmatpush1.bf16.msra.mxu0 %v418
    %581 = vmatprep.subr.bf16.mxu0 %v422
    %582 = vmatpush1.bf16.msra.mxu0 %v421
    %583 = vmatprep.subr.bf16.mxu0 0
    %584 = vmatpush1.bf16.msra.mxu0 0
    %585 = vmatprep.subr.bf16.mxu0 0
    %586 = vmatpush1.bf16.msra.mxu0 0
    %587 = vmatprep.subr.bf16.mxu0 0
    %588 = vmatpush1.bf16.msra.mxu0 0
    %589 = vmatprep.subr.bf16.mxu0 0
    %590 = vmatpush1.bf16.msra.mxu0 0
    %591 = vmatprep.subr.bf16.mxu0 0
    %592 = vmatpush1.bf16.msra.mxu0 0
    %593 = vmatprep.subr.bf16.mxu0 0
    %594 = vmatpush1.bf16.msra.mxu0 0
    %595 = vmatprep.subr.bf16.mxu0 0
    %596 = vmatpush1.bf16.msra.mxu0 0
    %597 = vmatprep.subr.bf16.mxu0 0
    %598 = vmatpush1.bf16.msra.mxu0 0
    %599 = vmatprep.mubr.bf16.mxu0 0
    %600 = vmatmul.mubr.bf16.gmra.mrb[0].mxu0 %v566
    %v601 = vpop.f32.mrb[0].mxu0
    %v602 = vadd.f32 %v452, %v601
    %v603 = vpop.f32.mrb[0].mxu0
    %v604 = vadd.f32 %v456, %v603
    %v605 = vpop.f32.mrb[0].mxu0
    %v606 = vpop.f32.mrb[0].mxu0
    %607 = vdwg.mxu0
    %608 = vmatprep.subr.bf16.mxu0 0
    %609 = vmatpush1.bf16.msra.mxu0 %v402
    %610 = vmatprep.subr.bf16.mxu0 0
    %611 = vmatpush1.bf16.msra.mxu0 %v405
    %612 = vmatprep.subr.bf16.mxu0 0
    %613 = vmatpush1.bf16.msra.mxu0 %v408
    %614 = vmatprep.subr.bf16.mxu0 0
    %615 = vmatpush1.bf16.msra.mxu0 %v411
    %616 = vmatprep.subr.bf16.mxu0 0
    %617 = vmatpush1.bf16.msra.mxu0 %v414
    %618 = vmatprep.subr.bf16.mxu0 0
    %619 = vmatpush1.bf16.msra.mxu0 %v417
    %620 = vmatprep.subr.bf16.mxu0 0
    %621 = vmatpush1.bf16.msra.mxu0 %v420
    %622 = vmatprep.subr.bf16.mxu0 0
    %623 = vmatpush1.bf16.msra.mxu0 %v423
    %624 = vmatprep.subr.bf16.mxu0 0
    %625 = vmatpush1.bf16.msra.mxu0 0
    %626 = vmatprep.subr.bf16.mxu0 0
    %627 = vmatpush1.bf16.msra.mxu0 0
    %628 = vmatprep.subr.bf16.mxu0 0
    %629 = vmatpush1.bf16.msra.mxu0 0
    %630 = vmatprep.subr.bf16.mxu0 0
    %631 = vmatpush1.bf16.msra.mxu0 0
    %632 = vmatprep.subr.bf16.mxu0 0
    %633 = vmatpush1.bf16.msra.mxu0 0
    %634 = vmatprep.subr.bf16.mxu0 0
    %635 = vmatpush1.bf16.msra.mxu0 0
    %636 = vmatprep.subr.bf16.mxu0 0
    %637 = vmatpush1.bf16.msra.mxu0 0
    %638 = vmatprep.subr.bf16.mxu0 0
    %639 = vmatpush1.bf16.msra.mxu0 0
    %640 = vmatprep.mubr.bf16.mxu0 0
    %641 = vmatmul.mubr.bf16.gmra.mrb[0].mxu0 %v566
    %v642 = vpop.f32.mrb[0].mxu0
    %v643 = vadd.f32 %v460, %v642
    %v644 = vpop.f32.mrb[0].mxu0
    %v645 = vpop.f32.mrb[0].mxu0
    %v646 = vpop.f32.mrb[0].mxu0
    %647 = vdwg.mxu0
    %v649 = vrot.slane %v602, 7
    %v651 = vadd.f32 %v241, %v649
    %v652 = vxor.u32 %v651, 2147483648
    %v653 = vmul.f32 %v652, 1.442695
    %v654 = vpow.pop %v653
    %v655 = vadd.f32 %v654, 1.0
    %v656 = vrcp.pop %v655
    %v657 = vmul.f32 1.0, %v656
    %v659 = vrot.slane %v604, 7
    %v661 = vadd.f32 %v243, %v659
    %v662 = vxor.u32 %v661, 2147483648
    %v663 = vmul.f32 %v662, 1.442695
    %v664 = vpow.pop %v663
    %v665 = vadd.f32 %v664, 1.0
    %v666 = vrcp.pop %v665
    %v667 = vmul.f32 1.0, %v666
    %v669 = vrot.slane %v643, 7
    %v671 = vmul.f32 %v657, %v669
    %v672 = vadd.f32 %v282, %v671
    %v673 = vtanh.pop %v672
    %v674 = vsub.f32 1.0, %v667
    %v675 = vmul.f32 %v674, %v673
    %v677 = vrot.slane %v565, 7
    %v679 = vmul.f32 %v667, %v677
    %v680 = vadd.f32 %v675, %v679
    %vm681 = vcmask 1040384
    %v682 = vsel %vm681, %v565, %v680
    %v683 = vpack.c.bf16 %v682, %v682
    %v684 = vld [vmem:[%s5] sm:$0xf]
    %v685 = vld [vmem:[%s5 + $0x4] sm:$0xf]
    %v686 = vld [vmem:[%s5 + $0x8] sm:$0xf]
    %v687 = vld [vmem:[%s5 + $0xc] sm:$0xf]
    %v688 = vld [vmem:[%s5 + $0x10] sm:$0xf]
    %v689 = vld [vmem:[%s5 + $0x14] sm:$0xf]
    %v690 = vld [vmem:[%s5 + $0x18] sm:$0xf]
    %v691 = vld [vmem:[%s5 + $0x1c] sm:$0xf]
    %v692 = vld [vmem:[%s5 + $0x20] sm:$0xf]
    %v693 = vld [vmem:[%s5 + $0x24] sm:$0xf]
    %v694 = vld [vmem:[%s5 + $0x28] sm:$0xf]
    %v695 = vld [vmem:[%s5 + $0x2c] sm:$0xf]
    %v696 = vld [vmem:[%s5 + $0x30] sm:$0xf]
    %v697 = vld [vmem:[%s5 + $0x34] sm:$0xf]
    %v698 = vld [vmem:[%s5 + $0x38] sm:$0xf]
    %v699 = vld [vmem:[%s5 + $0x3c] sm:$0xf]
    %v700 = vld [vmem:[%s6] sm:$0x1]
    %v702 = vlaneseq
    %v703 = vshrl.u32 %v702, 7
    %v704 = vsub.s32 0, %v703
    %v705 = vrot.slane %v700, %v704
    %v723 = vunpack.c.l.b16 %v684
    %v724 = vunpack.c.l.b16 %v685
    %v725 = vunpack.c.l.b16 %v686
    %v726 = vunpack.c.l.b16 %v687
    %v727 = vunpack.c.l.b16 %v688
    %v728 = vunpack.c.l.b16 %v689
    %v729 = vunpack.c.l.b16 %v690
    %v730 = vunpack.c.l.b16 %v691
    %v731 = vunpack.c.l.b16 %v692
    %v732 = vunpack.c.l.b16 %v693
    %v733 = vunpack.c.l.b16 %v694
    %v734 = vunpack.c.l.b16 %v695
    %v735 = vunpack.c.l.b16 %v696
    %v736 = vunpack.c.l.b16 %v697
    %v737 = vunpack.c.l.b16 %v698
    %v738 = vunpack.c.l.b16 %v699
    %v739 = vpack.c.b16 %v724, %v723
    %v740 = vpack.c.b16 %v726, %v725
    %v741 = vpack.c.b16 %v728, %v727
    %v742 = vpack.c.b16 %v730, %v729
    %v743 = vpack.c.b16 %v732, %v731
    %v744 = vpack.c.b16 %v734, %v733
    %v745 = vpack.c.b16 %v736, %v735
    %v746 = vpack.c.b16 %v738, %v737
    %755 = vmatprep.subr.bf16.mxu0 0
    %756 = vmatpush1.bf16.msra.mxu0 %v739
    %757 = vmatprep.subr.bf16.mxu0 0
    %758 = vmatpush1.bf16.msra.mxu0 %v740
    %759 = vmatprep.subr.bf16.mxu0 0
    %760 = vmatpush1.bf16.msra.mxu0 %v741
    %761 = vmatprep.subr.bf16.mxu0 0
    %762 = vmatpush1.bf16.msra.mxu0 %v742
    %763 = vmatprep.subr.bf16.mxu0 0
    %764 = vmatpush1.bf16.msra.mxu0 %v743
    %765 = vmatprep.subr.bf16.mxu0 0
    %766 = vmatpush1.bf16.msra.mxu0 %v744
    %767 = vmatprep.subr.bf16.mxu0 0
    %768 = vmatpush1.bf16.msra.mxu0 %v745
    %769 = vmatprep.subr.bf16.mxu0 0
    %770 = vmatpush1.bf16.msra.mxu0 %v746
    %771 = vmatprep.subr.bf16.mxu0 0
    %772 = vmatpush1.bf16.msra.mxu0 0
    %773 = vmatprep.subr.bf16.mxu0 0
    %774 = vmatpush1.bf16.msra.mxu0 0
    %775 = vmatprep.subr.bf16.mxu0 0
    %776 = vmatpush1.bf16.msra.mxu0 0
    %777 = vmatprep.subr.bf16.mxu0 0
    %778 = vmatpush1.bf16.msra.mxu0 0
    %779 = vmatprep.subr.bf16.mxu0 0
    %780 = vmatpush1.bf16.msra.mxu0 0
    %781 = vmatprep.subr.bf16.mxu0 0
    %782 = vmatpush1.bf16.msra.mxu0 0
    %783 = vmatprep.subr.bf16.mxu0 0
    %784 = vmatpush1.bf16.msra.mxu0 0
    %785 = vmatprep.subr.bf16.mxu0 0
    %786 = vmatpush1.bf16.msra.mxu0 0
    %787 = vmatprep.mubr.bf16.mxu0 0
    %788 = vmatmul.mubr.bf16.gmra.mrb[0].mxu0 %v683
    %v789 = vpop.f32.mrb[0].mxu0
    %v790 = vadd.f32 %v705, %v789
    %v791 = vpop.f32.mrb[0].mxu0
    %v792 = vpop.f32.mrb[0].mxu0
    %v793 = vpop.f32.mrb[0].mxu0
    %794 = vdwg.mxu0
    %v795 = vtanh.pop %v790
    %796 = vst [vmem:[#allocation2] sm:$0x3] %v795
    // Predicated region
    $region30: #{reference_encoder_forward.5} parent=1 // pred_check
      _
    $region31: #{reference_encoder_forward.5} parent=1 // pred_check_branch
      %798 = sbr.rel (0) target = $region33
    $region32: #{reference_encoder_forward.5} parent=1 // pred_region
      %s800 = ssub.s32 32, 32
      %801 = vsyncadd [#allocation3], %s800
      %s803 = sshll.u32 [#allocation2], 4
      %s804 = int_to_ptr.vmem [resolvable:$true] %s803
      %806 = dma.vmem_to_hbm [thread:$0]  %s804, 32, %s7, [#allocation3]
    $region33: #{reference_encoder_forward.5} parent=1 // pred_fallthru
      _
    // Predicated region
    $region34: #{reference_encoder_forward.5} parent=1 // pred_check
      _
    $region35: #{reference_encoder_forward.5} parent=1 // pred_check_branch
      %808 = sbr.rel (0) target = $region37
    $region36: #{reference_encoder_forward.5} parent=1 // pred_region
      %809 = dma.done [#allocation3], 32
    $region37: #{reference_encoder_forward.5} parent=1 // pred_fallthru
      _
    %810 = vsyncpa [#allocation3], 1

</llo_original>
